<compile_context>
chip_gen: v7x
topology: tpu7x:2x2x1
jax: 0.10.0
libtpu: 0.0.40
codegen_flags: <defaults>
</compile_context>

<pallas_src>
import functools
import math

import jax
import jax.numpy as jnp
from jax import lax
from jax.experimental import pallas as pl
from jax.experimental.pallas import tpu as pltpu


# ------------------------------ fused kernel --------------------------------

def _encoder_layer_kernel(q_ref, kv_ref, wq_ref, wkv_ref, wfc_ref,
                          w1_ref, b1_ref, w2_ref, b2_ref,
                          out_ref, attn_ref, *, n_head, d_k, d_v, temperature):
    """One grid step == one batch element.  Everything stays in VMEM/vregs."""
    f32 = jnp.float32
    q_in = q_ref[0]                      # (lq, d_model)
    kv_in = kv_ref[0]                    # (lk, d_model)

    # --- fused Q and (K|V) projections -------------------------------------
    inv_temp = 1.0 / temperature
    qp = jnp.dot(q_in, wq_ref[...], preferred_element_type=f32) * inv_temp   # (lq, H*d_k)
    kvp = jnp.dot(kv_in, wkv_ref[...], preferred_element_type=f32)           # (lk, H*(d_k+d_v))
    kp = kvp[:, : n_head * d_k]                                              # (lk, H*d_k)
    vp = kvp[:, n_head * d_k:]                                               # (lk, H*d_v)

    # --- per-head attention + fused output projection (static unroll) ------
    mha = jnp.zeros(q_in.shape, f32)
    for h in range(n_head):
        qh = qp[:, h * d_k:(h + 1) * d_k]            # (lq, d_k)
        kh = kp[:, h * d_k:(h + 1) * d_k]            # (lk, d_k)
        vh = vp[:, h * d_v:(h + 1) * d_v]            # (lk, d_v)

        # s = q k^T  (contraction over d_k, no explicit transpose needed)
        s = lax.dot_general(qh, kh, (((1,), (1,)), ((), ())),
                            preferred_element_type=f32)          # (lq, lk)
        m = jnp.max(s, axis=-1, keepdims=True)
        p = jnp.exp(s - m)
        # approx=True is also fine here (denominator == 1 for lk == 1) but the
        # exact reciprocal keeps the 1e-4 self-test tight for free.
        attn = p * pl.reciprocal(jnp.sum(p, axis=-1, keepdims=True),
                                 approx=False)                   # (lq, lk)
        attn_ref[0, h, :, :] = attn

        oh = jnp.dot(attn, vh, preferred_element_type=f32)       # (lq, d_v)
        # fc(concat_h(o_h)) == sum_h o_h @ W_fc[h*d_v:(h+1)*d_v, :]
        mha = mha + jnp.dot(oh, wfc_ref[h * d_v:(h + 1) * d_v, :],
                            preferred_element_type=f32)

    mha = mha + q_in                     # MHA residual (dropout = identity)

    # --- position-wise FFN with fused residual ------------------------------
    hid = jnp.maximum(
        jnp.dot(mha, w1_ref[...], preferred_element_type=f32) + b1_ref[...],
        0.0)
    out_ref[0] = (jnp.dot(hid, w2_ref[...], preferred_element_type=f32)
                  + b2_ref[...] + mha)


def encoder_layer_pallas(enc_input, params, *, n_head, d_k, d_v):
    """EncoderLayer.forward: q = x[:, 0:1], k = v = x[:, 1:2]."""
    bs, seq, d_model = enc_input.shape
    assert seq >= 2, "EncoderLayer slices x[:, 0:1] and x[:, 1:2]"
    q_in = enc_input[:, 0:1, :]          # (bs, 1, d_model)
    kv_in = enc_input[:, 1:2, :]         # (bs, 1, d_model)
    lq, lk = 1, 1
    d_inner = params['w1'].shape[1]

    # Concatenate K and V projection weights -> one wider matmul in-kernel.
    wkv = jnp.concatenate([params['wk'], params['wv']], axis=1)

    kernel = functools.partial(_encoder_layer_kernel, n_head=n_head, d_k=d_k,
                               d_v=d_v, temperature=d_k ** 0.5)

    out, attn = pl.pallas_call(
        kernel,
        out_shape=(jax.ShapeDtypeStruct((bs, lq, d_model), jnp.float32),
                   jax.ShapeDtypeStruct((bs, n_head, lq, lk), jnp.float32)),
        grid=(bs,),
        in_specs=[
            pl.BlockSpec((1, lq, d_model), lambda b: (b, 0, 0)),          # q
            pl.BlockSpec((1, lk, d_model), lambda b: (b, 0, 0)),          # k=v
            pl.BlockSpec((d_model, n_head * d_k), lambda b: (0, 0)),      # wq
            pl.BlockSpec((d_model, n_head * (d_k + d_v)), lambda b: (0, 0)),  # wk|wv
            pl.BlockSpec((n_head * d_v, d_model), lambda b: (0, 0)),      # wfc
            pl.BlockSpec((d_model, d_inner), lambda b: (0, 0)),           # w1
            pl.BlockSpec((1, d_inner), lambda b: (0, 0)),                 # b1
            pl.BlockSpec((d_inner, d_model), lambda b: (0, 0)),           # w2
            pl.BlockSpec((1, d_model), lambda b: (0, 0)),                 # b2
        ],
        out_specs=[
            pl.BlockSpec((1, lq, d_model), lambda b: (b, 0, 0)),
            pl.BlockSpec((1, n_head, lq, lk), lambda b: (b, 0, 0, 0)),
        ],
        compiler_params=pltpu.CompilerParams(
            dimension_semantics=("parallel",)),   # batch rows -> 2 TCs on v7x
    )(q_in, kv_in, params['wq'], wkv, params['wfc'],
      params['w1'], params['b1'], params['w2'], params['b2'])
    return out, attn


# --------------------------- pure-JAX reference ------------------------------

def encoder_layer_ref(enc_input, params, *, n_head, d_k, d_v):
    bs, _, d_model = enc_input.shape
    q = enc_input[:, 0:1, :]
    k = enc_input[:, 1:2, :]
    v = enc_input[:, 1:2, :]
    lq, lk = q.shape[1], k.shape[1]
    residual = q
    qp = (q @ params['wq']).reshape(bs, lq, n_head, d_k).transpose(0, 2, 1, 3)
    kp = (k @ params['wk']).reshape(bs, lk, n_head, d_k).transpose(0, 2, 1, 3)
    vp = (v @ params['wv']).reshape(bs, lk, n_head, d_v).transpose(0, 2, 1, 3)
    s = jnp.einsum('bhqd,bhkd->bhqk', qp / (d_k ** 0.5), kp)
    attn = jax.nn.softmax(s, axis=-1)
    o = jnp.einsum('bhqk,bhkd->bhqd', attn, vp)
    o = o.transpose(0, 2, 1, 3).reshape(bs, lq, n_head * d_v)
    x = o @ params['wfc'] + residual
    h = jnp.maximum(x @ params['w1'] + params['b1'], 0.0)
    out = h @ params['w2'] + params['b2'] + x
    return out, attn


# ----------------------------- parameter init --------------------------------

def _xavier(key, shape):
    bound = math.sqrt(6.0 / (shape[0] + shape[1]))
    return jax.random.uniform(key, shape, jnp.float32, -bound, bound)


def init_encoder_layer(key, d_model, d_inner, n_head, d_k, d_v):
    ks = jax.random.split(key, 8)
    return dict(
        wq=_xavier(ks[0], (d_model, n_head * d_k)),
        wk=_xavier(ks[1], (d_model, n_head * d_k)),
        wv=_xavier(ks[2], (d_model, n_head * d_v)),
        wfc=_xavier(ks[3], (n_head * d_v, d_model)),
        w1=_xavier(ks[4], (d_model, d_inner)),
        b1=jax.random.uniform(ks[5], (1, d_inner), jnp.float32, -0.1, 0.1),
        w2=_xavier(ks[6], (d_inner, d_model)),
        b2=jax.random.uniform(ks[7], (1, d_model), jnp.float32, -0.1, 0.1),
    )


# ---------------------------------- main --------------------------------------

if __name__ == "__main__":
    cfg = dict(d_model=32, d_inner=64, n_head=4, d_k=8, d_v=8)
    bs, num_views = 2, 3

    key = jax.random.PRNGKey(0)
    k_param, k_x = jax.random.split(key)
    params = init_encoder_layer(k_param, **cfg)
    enc_input = jax.random.normal(k_x, (bs, num_views, cfg['d_model']), jnp.float32)

    fwd = jax.jit(functools.partial(encoder_layer_pallas,
                                    n_head=cfg['n_head'], d_k=cfg['d_k'], d_v=cfg['d_v']))
    out, attn = fwd(enc_input, params)
    out, attn = jax.block_until_ready((out, attn))
    assert out.shape == (bs, 1, cfg['d_model'])
    assert attn.shape == (bs, cfg['n_head'], 1, 1)

    ref_out, ref_attn = encoder_layer_ref(enc_input, params, n_head=cfg['n_head'],
                                          d_k=cfg['d_k'], d_v=cfg['d_v'])
    assert jnp.allclose(out, ref_out, atol=1e-4, rtol=1e-4), \
        "Pallas enc_output mismatch vs JAX reference"
    assert jnp.allclose(attn, ref_attn, atol=1e-4, rtol=1e-4), \
        "Pallas enc_slf_attn mismatch vs JAX reference"

    print("KERNEL_OK")
</pallas_src>

<mosaic_0001>
module attributes {stable_mosaic.version = 11 : i64} {
  func.func @_encoder_layer_kernel(%arg0: i32, %arg1: memref<1x1x32xf32, #tpu.memory_space<vmem>>, %arg2: memref<1x1x32xf32, #tpu.memory_space<vmem>>, %arg3: memref<32x32xf32, #tpu.memory_space<vmem>>, %arg4: memref<32x64xf32, #tpu.memory_space<vmem>>, %arg5: memref<32x32xf32, #tpu.memory_space<vmem>>, %arg6: memref<32x64xf32, #tpu.memory_space<vmem>>, %arg7: memref<1x64xf32, #tpu.memory_space<vmem>>, %arg8: memref<64x32xf32, #tpu.memory_space<vmem>>, %arg9: memref<1x32xf32, #tpu.memory_space<vmem>>, %arg10: memref<1x1x32xf32, #tpu.memory_space<vmem>>, %arg11: memref<1x4x1x1xf32, #tpu.memory_space<vmem>>) attributes {dimension_semantics = [#tpu.dimension_semantics<parallel>], iteration_bounds = array<i64: 2>, scalar_prefetch = 0 : i64, scratch_operands = 0 : i64, tpu.core_type = #tpu.core_type<tc>, window_params = [{transform_indices = @transform_0, window_bounds = array<i64: 1, 1, 32>}, {transform_indices = @transform_1, window_bounds = array<i64: 1, 1, 32>}, {pipeline_mode = #tpu.pipeline_mode<synchronous>, transform_indices = @transform_2, window_bounds = array<i64: 32, 32>}, {pipeline_mode = #tpu.pipeline_mode<synchronous>, transform_indices = @transform_3, window_bounds = array<i64: 32, 64>}, {pipeline_mode = #tpu.pipeline_mode<synchronous>, transform_indices = @transform_4, window_bounds = array<i64: 32, 32>}, {pipeline_mode = #tpu.pipeline_mode<synchronous>, transform_indices = @transform_5, window_bounds = array<i64: 32, 64>}, {pipeline_mode = #tpu.pipeline_mode<synchronous>, transform_indices = @transform_6, window_bounds = array<i64: 1, 64>}, {pipeline_mode = #tpu.pipeline_mode<synchronous>, transform_indices = @transform_7, window_bounds = array<i64: 64, 32>}, {pipeline_mode = #tpu.pipeline_mode<synchronous>, transform_indices = @transform_8, window_bounds = array<i64: 1, 32>}, {transform_indices = @transform_9, window_bounds = array<i64: 1, 1, 32>}, {transform_indices = @transform_10, window_bounds = array<i64: 1, 4, 1, 1>}]} {
    %c0 = arith.constant 0 : index
    %c0_0 = arith.constant 0 : index
    %c0_1 = arith.constant 0 : index
    %0 = vector.load %arg1[%c0, %c0_0, %c0_1] : memref<1x1x32xf32, #tpu.memory_space<vmem>>, vector<1x1x32xf32>
    %1 = vector.shape_cast %0 : vector<1x1x32xf32> to vector<1x32xf32>
    %c0_2 = arith.constant 0 : index
    %c0_3 = arith.constant 0 : index
    %c0_4 = arith.constant 0 : index
    %2 = vector.load %arg2[%c0_2, %c0_3, %c0_4] : memref<1x1x32xf32, #tpu.memory_space<vmem>>, vector<1x1x32xf32>
    %3 = vector.shape_cast %2 : vector<1x1x32xf32> to vector<1x32xf32>
    %c0_5 = arith.constant 0 : index
    %c0_6 = arith.constant 0 : index
    %4 = vector.load %arg3[%c0_5, %c0_6] : memref<32x32xf32, #tpu.memory_space<vmem>>, vector<32x32xf32>
    %cst = arith.constant dense<0.000000e+00> : vector<1x32xf32>
    %5 = tpu.matmul %1, %4, %cst {dimension_numbers = #tpu.dot_dimension_numbers<[1], [0], [0], [1], [0, 0, 1, 1], [], []>} : vector<1x32xf32>, vector<32x32xf32>, vector<1x32xf32> -> vector<1x32xf32>
    %cst_7 = arith.constant 0.353553385 : f32
    %6 = vector.broadcast %cst_7 : f32 to vector<1x32xf32>
    %7 = arith.mulf %5, %6 : vector<1x32xf32>
    %c0_8 = arith.constant 0 : index
    %c0_9 = arith.constant 0 : index
    %8 = vector.load %arg4[%c0_8, %c0_9] : memref<32x64xf32, #tpu.memory_space<vmem>>, vector<32x64xf32>
    %cst_10 = arith.constant dense<0.000000e+00> : vector<1x64xf32>
    %9 = tpu.matmul %3, %8, %cst_10 {dimension_numbers = #tpu.dot_dimension_numbers<[1], [0], [0], [1], [0, 0, 1, 1], [], []>} : vector<1x32xf32>, vector<32x64xf32>, vector<1x64xf32> -> vector<1x64xf32>
    %10 = vector.extract_strided_slice %9 {offsets = [0, 0], sizes = [1, 32], strides = [1, 1]} : vector<1x64xf32> to vector<1x32xf32>
    %11 = vector.extract_strided_slice %9 {offsets = [0, 32], sizes = [1, 32], strides = [1, 1]} : vector<1x64xf32> to vector<1x32xf32>
    %cst_11 = arith.constant 0.000000e+00 : f32
    %12 = vector.broadcast %cst_11 : f32 to vector<1x32xf32>
    %13 = vector.extract_strided_slice %7 {offsets = [0, 0], sizes = [1, 8], strides = [1, 1]} : vector<1x32xf32> to vector<1x8xf32>
    %14 = vector.extract_strided_slice %10 {offsets = [0, 0], sizes = [1, 8], strides = [1, 1]} : vector<1x32xf32> to vector<1x8xf32>
    %15 = vector.extract_strided_slice %11 {offsets = [0, 0], sizes = [1, 8], strides = [1, 1]} : vector<1x32xf32> to vector<1x8xf32>
    %cst_12 = arith.constant dense<0.000000e+00> : vector<1x1xf32>
    %16 = tpu.matmul %13, %14, %cst_12 {dimension_numbers = #tpu.dot_dimension_numbers<[1], [1], [0], [0], [0, 0, 1, 0], [], []>} : vector<1x8xf32>, vector<1x8xf32>, vector<1x1xf32> -> vector<1x1xf32>
    %cst_13 = arith.constant dense<0xFF800000> : vector<1xf32>
    %17 = vector.multi_reduction <maximumf>, %16, %cst_13 [1] : vector<1x1xf32> to vector<1xf32>
    %18 = vector.shape_cast %17 : vector<1xf32> to vector<1x1xf32>
    %19 = arith.subf %16, %18 : vector<1x1xf32>
    %20 = math.exp %19 : vector<1x1xf32>
    %cst_14 = arith.constant dense<0.000000e+00> : vector<1xf32>
    %21 = vector.multi_reduction <add>, %20, %cst_14 [1] : vector<1x1xf32> to vector<1xf32>
    %22 = vector.shape_cast %21 : vector<1xf32> to vector<1x1xf32>
    %23 = tpu.reciprocal %22 : vector<1x1xf32> -> vector<1x1xf32>
    %24 = arith.mulf %20, %23 : vector<1x1xf32>
    %c0_15 = arith.constant 0 : index
    %c0_16 = arith.constant 0 : index
    %c0_17 = arith.constant 0 : index
    %c0_18 = arith.constant 0 : index
    %25 = vector.load %arg11[%c0_15, %c0_16, %c0_17, %c0_18] : memref<1x4x1x1xf32, #tpu.memory_space<vmem>>, vector<1x1x1x1xf32>
    %26 = vector.shape_cast %25 : vector<1x1x1x1xf32> to vector<1x1xf32>
    %27 = vector.shape_cast %24 : vector<1x1xf32> to vector<1x1x1x1xf32>
    tpu.vector_store %arg11[%c0_15, %c0_16, %c0_17, %c0_18], %27 {strides = array<i32>} : memref<1x4x1x1xf32, #tpu.memory_space<vmem>>, vector<1x1x1x1xf32>,
    %cst_19 = arith.constant dense<0.000000e+00> : vector<1x8xf32>
    %28 = tpu.matmul %24, %15, %cst_19 {dimension_numbers = #tpu.dot_dimension_numbers<[1], [0], [0], [1], [0, 0, 1, 1], [], []>} : vector<1x1xf32>, vector<1x8xf32>, vector<1x8xf32> -> vector<1x8xf32>
    %c0_20 = arith.constant 0 : index
    %c0_21 = arith.constant 0 : index
    %29 = vector.load %arg5[%c0_20, %c0_21] : memref<32x32xf32, #tpu.memory_space<vmem>>, vector<8x32xf32>
    %cst_22 = arith.constant dense<0.000000e+00> : vector<1x32xf32>
    %30 = tpu.matmul %28, %29, %cst_22 {dimension_numbers = #tpu.dot_dimension_numbers<[1], [0], [0], [1], [0, 0, 1, 1], [], []>} : vector<1x8xf32>, vector<8x32xf32>, vector<1x32xf32> -> vector<1x32xf32>
    %31 = arith.addf %12, %30 : vector<1x32xf32>
    %32 = vector.extract_strided_slice %7 {offsets = [0, 8], sizes = [1, 8], strides = [1, 1]} : vector<1x32xf32> to vector<1x8xf32>
    %33 = vector.extract_strided_slice %10 {offsets = [0, 8], sizes = [1, 8], strides = [1, 1]} : vector<1x32xf32> to vector<1x8xf32>
    %34 = vector.extract_strided_slice %11 {offsets = [0, 8], sizes = [1, 8], strides = [1, 1]} : vector<1x32xf32> to vector<1x8xf32>
    %cst_23 = arith.constant dense<0.000000e+00> : vector<1x1xf32>
    %35 = tpu.matmul %32, %33, %cst_23 {dimension_numbers = #tpu.dot_dimension_numbers<[1], [1], [0], [0], [0, 0, 1, 0], [], []>} : vector<1x8xf32>, vector<1x8xf32>, vector<1x1xf32> -> vector<1x1xf32>
    %cst_24 = arith.constant dense<0xFF800000> : vector<1xf32>
    %36 = vector.multi_reduction <maximumf>, %35, %cst_24 [1] : vector<1x1xf32> to vector<1xf32>
    %37 = vector.shape_cast %36 : vector<1xf32> to vector<1x1xf32>
    %38 = arith.subf %35, %37 : vector<1x1xf32>
    %39 = math.exp %38 : vector<1x1xf32>
    %cst_25 = arith.constant dense<0.000000e+00> : vector<1xf32>
    %40 = vector.multi_reduction <add>, %39, %cst_25 [1] : vector<1x1xf32> to vector<1xf32>
    %41 = vector.shape_cast %40 : vector<1xf32> to vector<1x1xf32>
    %42 = tpu.reciprocal %41 : vector<1x1xf32> -> vector<1x1xf32>
    %43 = arith.mulf %39, %42 : vector<1x1xf32>
    %c0_26 = arith.constant 0 : index
    %c1 = arith.constant 1 : index
    %c0_27 = arith.constant 0 : index
    %c0_28 = arith.constant 0 : index
    %44 = vector.load %arg11[%c0_26, %c1, %c0_27, %c0_28] : memref<1x4x1x1xf32, #tpu.memory_space<vmem>>, vector<1x1x1x1xf32>
    %45 = vector.shape_cast %44 : vector<1x1x1x1xf32> to vector<1x1xf32>
    %46 = vector.shape_cast %43 : vector<1x1xf32> to vector<1x1x1x1xf32>
    tpu.vector_store %arg11[%c0_26, %c1, %c0_27, %c0_28], %46 {strides = array<i32>} : memref<1x4x1x1xf32, #tpu.memory_space<vmem>>, vector<1x1x1x1xf32>,
    %cst_29 = arith.constant dense<0.000000e+00> : vector<1x8xf32>
    %47 = tpu.matmul %43, %34, %cst_29 {dimension_numbers = #tpu.dot_dimension_numbers<[1], [0], [0], [1], [0, 0, 1, 1], [], []>} : vector<1x1xf32>, vector<1x8xf32>, vector<1x8xf32> -> vector<1x8xf32>
    %c8 = arith.constant 8 : index
    %c0_30 = arith.constant 0 : index
    %48 = vector.load %arg5[%c8, %c0_30] : memref<32x32xf32, #tpu.memory_space<vmem>>, vector<8x32xf32>
    %cst_31 = arith.constant dense<0.000000e+00> : vector<1x32xf32>
    %49 = tpu.matmul %47, %48, %cst_31 {dimension_numbers = #tpu.dot_dimension_numbers<[1], [0], [0], [1], [0, 0, 1, 1], [], []>} : vector<1x8xf32>, vector<8x32xf32>, vector<1x32xf32> -> vector<1x32xf32>
    %50 = arith.addf %31, %49 : vector<1x32xf32>
    %51 = vector.extract_strided_slice %7 {offsets = [0, 16], sizes = [1, 8], strides = [1, 1]} : vector<1x32xf32> to vector<1x8xf32>
    %52 = vector.extract_strided_slice %10 {offsets = [0, 16], sizes = [1, 8], strides = [1, 1]} : vector<1x32xf32> to vector<1x8xf32>
    %53 = vector.extract_strided_slice %11 {offsets = [0, 16], sizes = [1, 8], strides = [1, 1]} : vector<1x32xf32> to vector<1x8xf32>
    %cst_32 = arith.constant dense<0.000000e+00> : vector<1x1xf32>
    %54 = tpu.matmul %51, %52, %cst_32 {dimension_numbers = #tpu.dot_dimension_numbers<[1], [1], [0], [0], [0, 0, 1, 0], [], []>} : vector<1x8xf32>, vector<1x8xf32>, vector<1x1xf32> -> vector<1x1xf32>
    %cst_33 = arith.constant dense<0xFF800000> : vector<1xf32>
    %55 = vector.multi_reduction <maximumf>, %54, %cst_33 [1] : vector<1x1xf32> to vector<1xf32>
    %56 = vector.shape_cast %55 : vector<1xf32> to vector<1x1xf32>
    %57 = arith.subf %54, %56 : vector<1x1xf32>
    %58 = math.exp %57 : vector<1x1xf32>
    %cst_34 = arith.constant dense<0.000000e+00> : vector<1xf32>
    %59 = vector.multi_reduction <add>, %58, %cst_34 [1] : vector<1x1xf32> to vector<1xf32>
    %60 = vector.shape_cast %59 : vector<1xf32> to vector<1x1xf32>
    %61 = tpu.reciprocal %60 : vector<1x1xf32> -> vector<1x1xf32>
    %62 = arith.mulf %58, %61 : vector<1x1xf32>
    %c0_35 = arith.constant 0 : index
    %c2 = arith.constant 2 : index
    %c0_36 = arith.constant 0 : index
    %c0_37 = arith.constant 0 : index
    %63 = vector.load %arg11[%c0_35, %c2, %c0_36, %c0_37] : memref<1x4x1x1xf32, #tpu.memory_space<vmem>>, vector<1x1x1x1xf32>
    %64 = vector.shape_cast %63 : vector<1x1x1x1xf32> to vector<1x1xf32>
    %65 = vector.shape_cast %62 : vector<1x1xf32> to vector<1x1x1x1xf32>
    tpu.vector_store %arg11[%c0_35, %c2, %c0_36, %c0_37], %65 {strides = array<i32>} : memref<1x4x1x1xf32, #tpu.memory_space<vmem>>, vector<1x1x1x1xf32>,
    %cst_38 = arith.constant dense<0.000000e+00> : vector<1x8xf32>
    %66 = tpu.matmul %62, %53, %cst_38 {dimension_numbers = #tpu.dot_dimension_numbers<[1], [0], [0], [1], [0, 0, 1, 1], [], []>} : vector<1x1xf32>, vector<1x8xf32>, vector<1x8xf32> -> vector<1x8xf32>
    %c16 = arith.constant 16 : index
    %c0_39 = arith.constant 0 : index
    %67 = vector.load %arg5[%c16, %c0_39] : memref<32x32xf32, #tpu.memory_space<vmem>>, vector<8x32xf32>
    %cst_40 = arith.constant dense<0.000000e+00> : vector<1x32xf32>
    %68 = tpu.matmul %66, %67, %cst_40 {dimension_numbers = #tpu.dot_dimension_numbers<[1], [0], [0], [1], [0, 0, 1, 1], [], []>} : vector<1x8xf32>, vector<8x32xf32>, vector<1x32xf32> -> vector<1x32xf32>
    %69 = arith.addf %50, %68 : vector<1x32xf32>
    %70 = vector.extract_strided_slice %7 {offsets = [0, 24], sizes = [1, 8], strides = [1, 1]} : vector<1x32xf32> to vector<1x8xf32>
    %71 = vector.extract_strided_slice %10 {offsets = [0, 24], sizes = [1, 8], strides = [1, 1]} : vector<1x32xf32> to vector<1x8xf32>
    %72 = vector.extract_strided_slice %11 {offsets = [0, 24], sizes = [1, 8], strides = [1, 1]} : vector<1x32xf32> to vector<1x8xf32>
    %cst_41 = arith.constant dense<0.000000e+00> : vector<1x1xf32>
    %73 = tpu.matmul %70, %71, %cst_41 {dimension_numbers = #tpu.dot_dimension_numbers<[1], [1], [0], [0], [0, 0, 1, 0], [], []>} : vector<1x8xf32>, vector<1x8xf32>, vector<1x1xf32> -> vector<1x1xf32>
    %cst_42 = arith.constant dense<0xFF800000> : vector<1xf32>
    %74 = vector.multi_reduction <maximumf>, %73, %cst_42 [1] : vector<1x1xf32> to vector<1xf32>
    %75 = vector.shape_cast %74 : vector<1xf32> to vector<1x1xf32>
    %76 = arith.subf %73, %75 : vector<1x1xf32>
    %77 = math.exp %76 : vector<1x1xf32>
    %cst_43 = arith.constant dense<0.000000e+00> : vector<1xf32>
    %78 = vector.multi_reduction <add>, %77, %cst_43 [1] : vector<1x1xf32> to vector<1xf32>
    %79 = vector.shape_cast %78 : vector<1xf32> to vector<1x1xf32>
    %80 = tpu.reciprocal %79 : vector<1x1xf32> -> vector<1x1xf32>
    %81 = arith.mulf %77, %80 : vector<1x1xf32>
    %c0_44 = arith.constant 0 : index
    %c3 = arith.constant 3 : index
    %c0_45 = arith.constant 0 : index
    %c0_46 = arith.constant 0 : index
    %82 = vector.load %arg11[%c0_44, %c3, %c0_45, %c0_46] : memref<1x4x1x1xf32, #tpu.memory_space<vmem>>, vector<1x1x1x1xf32>
    %83 = vector.shape_cast %82 : vector<1x1x1x1xf32> to vector<1x1xf32>
    %84 = vector.shape_cast %81 : vector<1x1xf32> to vector<1x1x1x1xf32>
    tpu.vector_store %arg11[%c0_44, %c3, %c0_45, %c0_46], %84 {strides = array<i32>} : memref<1x4x1x1xf32, #tpu.memory_space<vmem>>, vector<1x1x1x1xf32>,
    %cst_47 = arith.constant dense<0.000000e+00> : vector<1x8xf32>
    %85 = tpu.matmul %81, %72, %cst_47 {dimension_numbers = #tpu.dot_dimension_numbers<[1], [0], [0], [1], [0, 0, 1, 1], [], []>} : vector<1x1xf32>, vector<1x8xf32>, vector<1x8xf32> -> vector<1x8xf32>
    %c24 = arith.constant 24 : index
    %c0_48 = arith.constant 0 : index
    %86 = vector.load %arg5[%c24, %c0_48] : memref<32x32xf32, #tpu.memory_space<vmem>>, vector<8x32xf32>
    %cst_49 = arith.constant dense<0.000000e+00> : vector<1x32xf32>
    %87 = tpu.matmul %85, %86, %cst_49 {dimension_numbers = #tpu.dot_dimension_numbers<[1], [0], [0], [1], [0, 0, 1, 1], [], []>} : vector<1x8xf32>, vector<8x32xf32>, vector<1x32xf32> -> vector<1x32xf32>
    %88 = arith.addf %69, %87 : vector<1x32xf32>
    %89 = arith.addf %88, %1 : vector<1x32xf32>
    %c0_50 = arith.constant 0 : index
    %c0_51 = arith.constant 0 : index
    %90 = vector.load %arg6[%c0_50, %c0_51] : memref<32x64xf32, #tpu.memory_space<vmem>>, vector<32x64xf32>
    %cst_52 = arith.constant dense<0.000000e+00> : vector<1x64xf32>
    %91 = tpu.matmul %89, %90, %cst_52 {dimension_numbers = #tpu.dot_dimension_numbers<[1], [0], [0], [1], [0, 0, 1, 1], [], []>} : vector<1x32xf32>, vector<32x64xf32>, vector<1x64xf32> -> vector<1x64xf32>
    %c0_53 = arith.constant 0 : index
    %c0_54 = arith.constant 0 : index
    %92 = vector.load %arg7[%c0_53, %c0_54] : memref<1x64xf32, #tpu.memory_space<vmem>>, vector<1x64xf32>
    %93 = arith.addf %91, %92 : vector<1x64xf32>
    %cst_55 = arith.constant 0.000000e+00 : f32
    %94 = vector.broadcast %cst_55 : f32 to vector<1x64xf32>
    %95 = arith.maximumf %93, %94 : vector<1x64xf32>
    %c0_56 = arith.constant 0 : index
    %c0_57 = arith.constant 0 : index
    %96 = vector.load %arg8[%c0_56, %c0_57] : memref<64x32xf32, #tpu.memory_space<vmem>>, vector<64x32xf32>
    %cst_58 = arith.constant dense<0.000000e+00> : vector<1x32xf32>
    %97 = tpu.matmul %95, %96, %cst_58 {dimension_numbers = #tpu.dot_dimension_numbers<[1], [0], [0], [1], [0, 0, 1, 1], [], []>} : vector<1x64xf32>, vector<64x32xf32>, vector<1x32xf32> -> vector<1x32xf32>
    %c0_59 = arith.constant 0 : index
    %c0_60 = arith.constant 0 : index
    %98 = vector.load %arg9[%c0_59, %c0_60] : memref<1x32xf32, #tpu.memory_space<vmem>>, vector<1x32xf32>
    %99 = arith.addf %97, %98 : vector<1x32xf32>
    %100 = arith.addf %99, %89 : vector<1x32xf32>
    %c0_61 = arith.constant 0 : index
    %c0_62 = arith.constant 0 : index
    %c0_63 = arith.constant 0 : index
    %101 = vector.load %arg10[%c0_61, %c0_62, %c0_63] : memref<1x1x32xf32, #tpu.memory_space<vmem>>, vector<1x1x32xf32>
    %102 = vector.shape_cast %101 : vector<1x1x32xf32> to vector<1x32xf32>
    %103 = vector.shape_cast %100 : vector<1x32xf32> to vector<1x1x32xf32>
    tpu.vector_store %arg10[%c0_61, %c0_62, %c0_63], %103 {strides = array<i32>} : memref<1x1x32xf32, #tpu.memory_space<vmem>>, vector<1x1x32xf32>,
    return
  }
  func.func @transform_0(%arg0: i32) -> (i32, i32, i32) {
    %c0_i32 = arith.constant 0 : i32
    %c0_i32_0 = arith.constant 0 : i32
    %c0_i32_1 = arith.constant 0 : i32
    return %arg0, %c0_i32, %c0_i32_0 : i32, i32, i32
  }
  func.func @transform_1(%arg0: i32) -> (i32, i32, i32) {
    %c0_i32 = arith.constant 0 : i32
    %c0_i32_0 = arith.constant 0 : i32
    %c0_i32_1 = arith.constant 0 : i32
    return %arg0, %c0_i32, %c0_i32_0 : i32, i32, i32
  }
  func.func @transform_2(%arg0: i32) -> (i32, i32) {
    %c0_i32 = arith.constant 0 : i32
    %c0_i32_0 = arith.constant 0 : i32
    %c0_i32_1 = arith.constant 0 : i32
    return %c0_i32, %c0_i32_0 : i32, i32
  }
  func.func @transform_3(%arg0: i32) -> (i32, i32) {
    %c0_i32 = arith.constant 0 : i32
    %c0_i32_0 = arith.constant 0 : i32
    %c0_i32_1 = arith.constant 0 : i32
    return %c0_i32, %c0_i32_0 : i32, i32
  }
  func.func @transform_4(%arg0: i32) -> (i32, i32) {
    %c0_i32 = arith.constant 0 : i32
    %c0_i32_0 = arith.constant 0 : i32
    %c0_i32_1 = arith.constant 0 : i32
    return %c0_i32, %c0_i32_0 : i32, i32
  }
  func.func @transform_5(%arg0: i32) -> (i32, i32) {
    %c0_i32 = arith.constant 0 : i32
    %c0_i32_0 = arith.constant 0 : i32
    %c0_i32_1 = arith.constant 0 : i32
    return %c0_i32, %c0_i32_0 : i32, i32
  }
  func.func @transform_6(%arg0: i32) -> (i32, i32) {
    %c0_i32 = arith.constant 0 : i32
    %c0_i32_0 = arith.constant 0 : i32
    %c0_i32_1 = arith.constant 0 : i32
    return %c0_i32, %c0_i32_0 : i32, i32
  }
  func.func @transform_7(%arg0: i32) -> (i32, i32) {
    %c0_i32 = arith.constant 0 : i32
    %c0_i32_0 = arith.constant 0 : i32
    %c0_i32_1 = arith.constant 0 : i32
    return %c0_i32, %c0_i32_0 : i32, i32
  }
  func.func @transform_8(%arg0: i32) -> (i32, i32) {
    %c0_i32 = arith.constant 0 : i32
    %c0_i32_0 = arith.constant 0 : i32
    %c0_i32_1 = arith.constant 0 : i32
    return %c0_i32, %c0_i32_0 : i32, i32
  }
  func.func @transform_9(%arg0: i32) -> (i32, i32, i32) {
    %c0_i32 = arith.constant 0 : i32
    %c0_i32_0 = arith.constant 0 : i32
    %c0_i32_1 = arith.constant 0 : i32
    return %arg0, %c0_i32, %c0_i32_0 : i32, i32, i32
  }
  func.func @transform_10(%arg0: i32) -> (i32, i32, i32, i32) {
    %c0_i32 = arith.constant 0 : i32
    %c0_i32_0 = arith.constant 0 : i32
    %c0_i32_1 = arith.constant 0 : i32
    %c0_i32_2 = arith.constant 0 : i32
    return %arg0, %c0_i32, %c0_i32_0, %c0_i32_1 : i32, i32, i32, i32
  }
}

</mosaic_0001>

<llo_original>
// kernel: encoder_layer_pallas.1
$region0: #{encoder_layer_pallas.1}
  #allocation0 [shape = 'u32[]', space=smem, size = 0x4, offset = 0x4, fixed_abs, tag = 'smem constant byte address 0x4 - core index']
  #allocation1 [shape = 'u32[144,128]{1,0:T(1,128)}', space=vmem, size = 0x12000, scoped, tag = 'internal scratch']
  %s0 = inlined_call_operand.vmem [shape: f32[2,1,32], index: 0, kind: input, shape index: {}]
  %s1 = inlined_call_operand.vmem [shape: f32[2,1,32], index: 1, kind: input, shape index: {}]
  %s2 = inlined_call_operand.vmem [shape: f32[32,32], index: 2, kind: input, shape index: {}]
  %s3 = inlined_call_operand.vmem [shape: f32[32,64], index: 3, kind: input, shape index: {}]
  %s4 = inlined_call_operand.vmem [shape: f32[32,32], index: 4, kind: input, shape index: {}]
  %s5 = inlined_call_operand.vmem [shape: f32[32,64], index: 5, kind: input, shape index: {}]
  %s6 = inlined_call_operand.vmem [shape: f32[1,64], index: 6, kind: input, shape index: {}]
  %s7 = inlined_call_operand.vmem [shape: f32[64,32], index: 7, kind: input, shape index: {}]
  %s8 = inlined_call_operand.vmem [shape: f32[1,32], index: 8, kind: input, shape index: {}]
  %s9 = inlined_call_operand.hbm [shape: f32[2,1,32], index: 9, kind: output, shape index: {0}]
  %s10 = inlined_call_operand.vmem [shape: f32[2,4,1,1], index: 10, kind: output, shape index: {1}]
  %11 = xla_tuple %s9, %s10
  %s12 = sld [smem:[#allocation0]]
  $region77: #{encoder_layer_pallas.1} parent=0
    _
  %s14 = ssub.s32 1, %s12
  %s15 = scalar_select 0, %s14, %s12
  $region1: #{encoder_layer_pallas.1} parent=0
    #allocation2 [shape = 'u8[1024]{0}', space=vmem, size = 0x400, scoped, tag = 'output window, operand 0']
    #allocation3 [shape = 's32[2]{0}', space=sflag, size = 0x8, scoped, tag = 'scoped memory for encoder_layer_pallas.1']
    %16 = vsyncpa [#allocation3], 0
    %s17 = scalar_lea.sflag [#allocation3], 1
    %18 = vsyncpa %s17, 0
    loop: start=0, step=1, limit=4
    $region2: #{encoder_layer_pallas.1} parent=1 // loop_pre_header
      _
    $region3: #{encoder_layer_pallas.1} parent=1 // loop_header
      %s20 = sphi 0, %s24
      %p21 = scmp.ge.s32.totalorder %s20, 4
      %s30 = sphi 0, %s32
      %s33 = sphi 0, %s30
      %s34 = sphi 0, %s33
      %s50 = sphi 0, %s34
      %s56 = sphi 0, %s58
      %s59 = sphi 0, %s56
      %s60 = sphi 0, %s59
      %s76 = sphi 0, %s60
      %s80 = sphi 0, %s80
      %s82 = sphi 0, %s80
      %s83 = sphi 0, %s82
      %s97 = sphi 0, %s83
      %s101 = sphi 0, %s101
      %s103 = sphi 0, %s101
      %s104 = sphi 0, %s103
      %s118 = sphi 0, %s104
      %s122 = sphi 0, %s122
      %s124 = sphi 0, %s122
      %s125 = sphi 0, %s124
      %s139 = sphi 0, %s125
      %s143 = sphi 0, %s143
      %s145 = sphi 0, %s143
      %s146 = sphi 0, %s145
      %s160 = sphi 0, %s146
      %s164 = sphi 0, %s164
      %s166 = sphi 0, %s164
      %s167 = sphi 0, %s166
      %s181 = sphi 0, %s167
      %s185 = sphi 0, %s185
      %s187 = sphi 0, %s185
      %s188 = sphi 0, %s187
      %s202 = sphi 0, %s188
      %s206 = sphi 0, %s206
      %s208 = sphi 0, %s206
      %s209 = sphi 0, %s208
      %s223 = sphi 0, %s209
      %s229 = sphi 0, %s231
      %s232 = sphi 0, %s229
      %s233 = sphi 0, %s232
      %s249 = sphi 0, %s233
      %s255 = sphi 0, %s257
      %s258 = sphi 0, %s255
      %s259 = sphi 0, %s258
      %s275 = sphi 0, %s259
    $region4: #{encoder_layer_pallas.1} parent=1 // loop_header_branch
      %23 = sbr.rel (%p21) target = $region8
    $region5: #{encoder_layer_pallas.1} parent=1 // loop_body
      %s25 = ssub.s32 %s20, 1
      %s26 = ssub.s32 %s20, 2
      %s27 = sadd.s32 %s20, 1
      %s28 = ssub.s32 %s20, %s27
      %p29 = scmp.eq.s32.totalorder %s28, 0
      %s31 = sadd.s32 %s30, 1
      %s32 = scalar_select %p29, %s30, %s31
      %p35 = pneg %p29
      %p36 = scmp.eq.s32.totalorder %s20, 1
      %p37 = por %p35, %p36
      %p38 = scmp.ne.s32.totalorder %s30, %s33
      %p39 = scmp.eq.s32.totalorder %s20, 0
      %p40 = por %p38, %p39
      %p41 = scmp.ne.s32.totalorder %s30, %s33
      %p42 = scmp.eq.s32.totalorder %s25, 1
      %p43 = por %p41, %p42
      %p44 = scmp.ne.s32.totalorder %s33, %s34
      %p45 = scmp.eq.s32.totalorder %s25, 0
      %p46 = por %p44, %p45
      %p47 = scmp.ne.s32.totalorder %s33, %s34
      %p48 = scmp.eq.s32.totalorder %s26, 1
      %p49 = por %p47, %p48
      %p51 = scmp.ne.s32.totalorder %s34, %s50
      %p52 = scmp.eq.s32.totalorder %s26, 0
      %p53 = por %p51, %p52
      %s54 = ssub.s32 %s20, %s27
      %p55 = scmp.eq.s32.totalorder %s54, 0
      %s57 = sadd.s32 %s56, 1
      %s58 = scalar_select %p55, %s56, %s57
      %p61 = pneg %p55
      %p62 = scmp.eq.s32.totalorder %s20, 1
      %p63 = por %p61, %p62
      %p64 = scmp.ne.s32.totalorder %s56, %s59
      %p65 = scmp.eq.s32.totalorder %s20, 0
      %p66 = por %p64, %p65
      %p67 = scmp.ne.s32.totalorder %s56, %s59
      %p68 = scmp.eq.s32.totalorder %s25, 1
      %p69 = por %p67, %p68
      %p70 = scmp.ne.s32.totalorder %s59, %s60
      %p71 = scmp.eq.s32.totalorder %s25, 0
      %p72 = por %p70, %p71
      %p73 = scmp.ne.s32.totalorder %s59, %s60
      %p74 = scmp.eq.s32.totalorder %s26, 1
      %p75 = por %p73, %p74
      %p77 = scmp.ne.s32.totalorder %s60, %s76
      %p78 = scmp.eq.s32.totalorder %s26, 0
      %p79 = por %p77, %p78
      %s81 = sadd.s32 %s80, 1
      %p84 = scmp.eq.s32.totalorder %s20, 1
      %p85 = scmp.ne.s32.totalorder %s80, %s82
      %p86 = scmp.eq.s32.totalorder %s20, 0
      %p87 = por %p85, %p86
      %p88 = scmp.ne.s32.totalorder %s80, %s82
      %p89 = scmp.eq.s32.totalorder %s25, 1
      %p90 = por %p88, %p89
      %p91 = scmp.ne.s32.totalorder %s82, %s83
      %p92 = scmp.eq.s32.totalorder %s25, 0
      %p93 = por %p91, %p92
      %p94 = scmp.ne.s32.totalorder %s82, %s83
      %p95 = scmp.eq.s32.totalorder %s26, 1
      %p96 = por %p94, %p95
      %p98 = scmp.ne.s32.totalorder %s83, %s97
      %p99 = scmp.eq.s32.totalorder %s26, 0
      %p100 = por %p98, %p99
      %s102 = sadd.s32 %s101, 1
      %p105 = scmp.eq.s32.totalorder %s20, 1
      %p106 = scmp.ne.s32.totalorder %s101, %s103
      %p107 = scmp.eq.s32.totalorder %s20, 0
      %p108 = por %p106, %p107
      %p109 = scmp.ne.s32.totalorder %s101, %s103
      %p110 = scmp.eq.s32.totalorder %s25, 1
      %p111 = por %p109, %p110
      %p112 = scmp.ne.s32.totalorder %s103, %s104
      %p113 = scmp.eq.s32.totalorder %s25, 0
      %p114 = por %p112, %p113
      %p115 = scmp.ne.s32.totalorder %s103, %s104
      %p116 = scmp.eq.s32.totalorder %s26, 1
      %p117 = por %p115, %p116
      %p119 = scmp.ne.s32.totalorder %s104, %s118
      %p120 = scmp.eq.s32.totalorder %s26, 0
      %p121 = por %p119, %p120
      %s123 = sadd.s32 %s122, 1
      %p126 = scmp.eq.s32.totalorder %s20, 1
      %p127 = scmp.ne.s32.totalorder %s122, %s124
      %p128 = scmp.eq.s32.totalorder %s20, 0
      %p129 = por %p127, %p128
      %p130 = scmp.ne.s32.totalorder %s122, %s124
      %p131 = scmp.eq.s32.totalorder %s25, 1
      %p132 = por %p130, %p131
      %p133 = scmp.ne.s32.totalorder %s124, %s125
      %p134 = scmp.eq.s32.totalorder %s25, 0
      %p135 = por %p133, %p134
      %p136 = scmp.ne.s32.totalorder %s124, %s125
      %p137 = scmp.eq.s32.totalorder %s26, 1
      %p138 = por %p136, %p137
      %p140 = scmp.ne.s32.totalorder %s125, %s139
      %p141 = scmp.eq.s32.totalorder %s26, 0
      %p142 = por %p140, %p141
      %s144 = sadd.s32 %s143, 1
      %p147 = scmp.eq.s32.totalorder %s20, 1
      %p148 = scmp.ne.s32.totalorder %s143, %s145
      %p149 = scmp.eq.s32.totalorder %s20, 0
      %p150 = por %p148, %p149
      %p151 = scmp.ne.s32.totalorder %s143, %s145
      %p152 = scmp.eq.s32.totalorder %s25, 1
      %p153 = por %p151, %p152
      %p154 = scmp.ne.s32.totalorder %s145, %s146
      %p155 = scmp.eq.s32.totalorder %s25, 0
      %p156 = por %p154, %p155
      %p157 = scmp.ne.s32.totalorder %s145, %s146
      %p158 = scmp.eq.s32.totalorder %s26, 1
      %p159 = por %p157, %p158
      %p161 = scmp.ne.s32.totalorder %s146, %s160
      %p162 = scmp.eq.s32.totalorder %s26, 0
      %p163 = por %p161, %p162
      %s165 = sadd.s32 %s164, 1
      %p168 = scmp.eq.s32.totalorder %s20, 1
      %p169 = scmp.ne.s32.totalorder %s164, %s166
      %p170 = scmp.eq.s32.totalorder %s20, 0
      %p171 = por %p169, %p170
      %p172 = scmp.ne.s32.totalorder %s164, %s166
      %p173 = scmp.eq.s32.totalorder %s25, 1
      %p174 = por %p172, %p173
      %p175 = scmp.ne.s32.totalorder %s166, %s167
      %p176 = scmp.eq.s32.totalorder %s25, 0
      %p177 = por %p175, %p176
      %p178 = scmp.ne.s32.totalorder %s166, %s167
      %p179 = scmp.eq.s32.totalorder %s26, 1
      %p180 = por %p178, %p179
      %p182 = scmp.ne.s32.totalorder %s167, %s181
      %p183 = scmp.eq.s32.totalorder %s26, 0
      %p184 = por %p182, %p183
      %s186 = sadd.s32 %s185, 1
      %p189 = scmp.eq.s32.totalorder %s20, 1
      %p190 = scmp.ne.s32.totalorder %s185, %s187
      %p191 = scmp.eq.s32.totalorder %s20, 0
      %p192 = por %p190, %p191
      %p193 = scmp.ne.s32.totalorder %s185, %s187
      %p194 = scmp.eq.s32.totalorder %s25, 1
      %p195 = por %p193, %p194
      %p196 = scmp.ne.s32.totalorder %s187, %s188
      %p197 = scmp.eq.s32.totalorder %s25, 0
      %p198 = por %p196, %p197
      %p199 = scmp.ne.s32.totalorder %s187, %s188
      %p200 = scmp.eq.s32.totalorder %s26, 1
      %p201 = por %p199, %p200
      %p203 = scmp.ne.s32.totalorder %s188, %s202
      %p204 = scmp.eq.s32.totalorder %s26, 0
      %p205 = por %p203, %p204
      %s207 = sadd.s32 %s206, 1
      %p210 = scmp.eq.s32.totalorder %s20, 1
      %p211 = scmp.ne.s32.totalorder %s206, %s208
      %p212 = scmp.eq.s32.totalorder %s20, 0
      %p213 = por %p211, %p212
      %p214 = scmp.ne.s32.totalorder %s206, %s208
      %p215 = scmp.eq.s32.totalorder %s25, 1
      %p216 = por %p214, %p215
      %p217 = scmp.ne.s32.totalorder %s208, %s209
      %p218 = scmp.eq.s32.totalorder %s25, 0
      %p219 = por %p217, %p218
      %p220 = scmp.ne.s32.totalorder %s208, %s209
      %p221 = scmp.eq.s32.totalorder %s26, 1
      %p222 = por %p220, %p221
      %p224 = scmp.ne.s32.totalorder %s209, %s223
      %p225 = scmp.eq.s32.totalorder %s26, 0
      %p226 = por %p224, %p225
      %s227 = ssub.s32 %s20, %s27
      %p228 = scmp.eq.s32.totalorder %s227, 0
      %s230 = sadd.s32 %s229, 1
      %s231 = scalar_select %p228, %s229, %s230
      %p234 = pneg %p228
      %p235 = scmp.eq.s32.totalorder %s20, 1
      %p236 = por %p234, %p235
      %p237 = scmp.ne.s32.totalorder %s229, %s232
      %p238 = scmp.eq.s32.totalorder %s20, 0
      %p239 = por %p237, %p238
      %p240 = scmp.ne.s32.totalorder %s229, %s232
      %p241 = scmp.eq.s32.totalorder %s25, 1
      %p242 = por %p240, %p241
      %p243 = scmp.ne.s32.totalorder %s232, %s233
      %p244 = scmp.eq.s32.totalorder %s25, 0
      %p245 = por %p243, %p244
      %p246 = scmp.ne.s32.totalorder %s232, %s233
      %p247 = scmp.eq.s32.totalorder %s26, 1
      %p248 = por %p246, %p247
      %p250 = scmp.ne.s32.totalorder %s233, %s249
      %p251 = scmp.eq.s32.totalorder %s26, 0
      %p252 = por %p250, %p251
      %s253 = ssub.s32 %s20, %s27
      %p254 = scmp.eq.s32.totalorder %s253, 0
      %s256 = sadd.s32 %s255, 1
      %s257 = scalar_select %p254, %s255, %s256
      %p260 = pneg %p254
      %p261 = scmp.eq.s32.totalorder %s20, 1
      %p262 = por %p260, %p261
      %p263 = scmp.ne.s32.totalorder %s255, %s258
      %p264 = scmp.eq.s32.totalorder %s20, 0
      %p265 = por %p263, %p264
      %p266 = scmp.ne.s32.totalorder %s255, %s258
      %p267 = scmp.eq.s32.totalorder %s25, 1
      %p268 = por %p266, %p267
      %p269 = scmp.ne.s32.totalorder %s258, %s259
      %p270 = scmp.eq.s32.totalorder %s25, 0
      %p271 = por %p269, %p270
      %p272 = scmp.ne.s32.totalorder %s258, %s259
      %p273 = scmp.eq.s32.totalorder %s26, 1
      %p274 = por %p272, %p273
      %p276 = scmp.ne.s32.totalorder %s259, %s275
      %p277 = scmp.eq.s32.totalorder %s26, 0
      %p278 = por %p276, %p277
      %p279 = scmp.le.s32.totalorder 1, %s20
      %p280 = scmp.lt.s32.totalorder %s20, 3
      %p281 = pnand %p279, %p280
      %p282 = pneg %p281
      // Predicated region
      $region9: #{encoder_layer_pallas.1} parent=5 // pred_check
        _
      $region10: #{encoder_layer_pallas.1} parent=5 // pred_check_branch
        %284 = sbr.rel (%p281) target = $region12
      $region11: #{encoder_layer_pallas.1} parent=5 // pred_region
        %s285 = ssub.s32 %s20, 1
        // Predicated region
        $region13: #{encoder_layer_pallas.1} parent=11 // pred_check
          %p286 = pneg %p93
        $region14: #{encoder_layer_pallas.1} parent=11 // pred_check_branch
          %288 = sbr.rel (%p286) target = $region16
        $region15: #{encoder_layer_pallas.1} parent=11 // pred_region
          _
        $region16: #{encoder_layer_pallas.1} parent=11 // pred_fallthru
          _
        // Predicated region
        $region17: #{encoder_layer_pallas.1} parent=11 // pred_check
          %p289 = pneg %p114
        $region18: #{encoder_layer_pallas.1} parent=11 // pred_check_branch
          %291 = sbr.rel (%p289) target = $region20
        $region19: #{encoder_layer_pallas.1} parent=11 // pred_region
          _
        $region20: #{encoder_layer_pallas.1} parent=11 // pred_fallthru
          _
        // Predicated region
        $region21: #{encoder_layer_pallas.1} parent=11 // pred_check
          %p292 = pneg %p135
        $region22: #{encoder_layer_pallas.1} parent=11 // pred_check_branch
          %294 = sbr.rel (%p292) target = $region24
        $region23: #{encoder_layer_pallas.1} parent=11 // pred_region
          _
        $region24: #{encoder_layer_pallas.1} parent=11 // pred_fallthru
          _
        // Predicated region
        $region25: #{encoder_layer_pallas.1} parent=11 // pred_check
          %p295 = pneg %p156
        $region26: #{encoder_layer_pallas.1} parent=11 // pred_check_branch
          %297 = sbr.rel (%p295) target = $region28
        $region27: #{encoder_layer_pallas.1} parent=11 // pred_region
          _
        $region28: #{encoder_layer_pallas.1} parent=11 // pred_fallthru
          _
        // Predicated region
        $region29: #{encoder_layer_pallas.1} parent=11 // pred_check
          %p298 = pneg %p177
        $region30: #{encoder_layer_pallas.1} parent=11 // pred_check_branch
          %300 = sbr.rel (%p298) target = $region32
        $region31: #{encoder_layer_pallas.1} parent=11 // pred_region
          _
        $region32: #{encoder_layer_pallas.1} parent=11 // pred_fallthru
          _
        // Predicated region
        $region33: #{encoder_layer_pallas.1} parent=11 // pred_check
          %p301 = pneg %p198
        $region34: #{encoder_layer_pallas.1} parent=11 // pred_check_branch
          %303 = sbr.rel (%p301) target = $region36
        $region35: #{encoder_layer_pallas.1} parent=11 // pred_region
          _
        $region36: #{encoder_layer_pallas.1} parent=11 // pred_fallthru
          _
        // Predicated region
        $region37: #{encoder_layer_pallas.1} parent=11 // pred_check
          %p304 = pneg %p219
        $region38: #{encoder_layer_pallas.1} parent=11 // pred_check_branch
          %306 = sbr.rel (%p304) target = $region40
        $region39: #{encoder_layer_pallas.1} parent=11 // pred_region
          _
        $region40: #{encoder_layer_pallas.1} parent=11 // pred_fallthru
          _
      $region12: #{encoder_layer_pallas.1} parent=5 // pred_fallthru
        _
      %p307 = scmp.lt.s32.totalorder %s20, 2
      // Predicated region
      $region41: #{encoder_layer_pallas.1} parent=5 // pred_check
        %p308 = pneg %p307
      $region42: #{encoder_layer_pallas.1} parent=5 // pred_check_branch
        %310 = sbr.rel (%p308) target = $region44
      $region43: #{encoder_layer_pallas.1} parent=5 // pred_region
        // Predicated region
        $region45: #{encoder_layer_pallas.1} parent=43 // pred_check
          %p311 = pneg %p40
        $region46: #{encoder_layer_pallas.1} parent=43 // pred_check_branch
          %313 = sbr.rel (%p311) target = $region48
        $region47: #{encoder_layer_pallas.1} parent=43 // pred_region
          %p314 = scmp.lt.s32.totalorder %s20, 1
          %s315 = scalar_select %p314, %s20, 1
          %s316 = scalar_lea.vmem %s0, %s315
        $region48: #{encoder_layer_pallas.1} parent=43 // pred_fallthru
          _
        // Predicated region
        $region49: #{encoder_layer_pallas.1} parent=43 // pred_check
          %p317 = pneg %p66
        $region50: #{encoder_layer_pallas.1} parent=43 // pred_check_branch
          %319 = sbr.rel (%p317) target = $region52
        $region51: #{encoder_layer_pallas.1} parent=43 // pred_region
          %p320 = scmp.lt.s32.totalorder %s20, 1
          %s321 = scalar_select %p320, %s20, 1
          %s322 = scalar_lea.vmem %s1, %s321
        $region52: #{encoder_layer_pallas.1} parent=43 // pred_fallthru
          _
      $region44: #{encoder_layer_pallas.1} parent=5 // pred_fallthru
        _
      %p323 = scmp.le.s32.totalorder 1, %s20
      %p324 = scmp.lt.s32.totalorder %s20, 3
      %p325 = pnand %p323, %p324
      %p326 = pneg %p325
      // Predicated region
      $region53: #{encoder_layer_pallas.1} parent=5 // pred_check
        _
      $region54: #{encoder_layer_pallas.1} parent=5 // pred_check_branch
        %328 = sbr.rel (%p325) target = $region56
      $region55: #{encoder_layer_pallas.1} parent=5 // pred_region
        %s329 = ssub.s32 %s20, 1
        %p330 = scmp.lt.s32.totalorder %s25, 1
        %s331 = scalar_select %p330, %s25, 1
        %s332 = scalar_lea.vmem %s0, %s331
        %p333 = pneg %p46
        %p334 = pneg %p43
        %p335 = scmp.lt.s32.totalorder %s25, 1
        %s336 = scalar_select %p335, %s25, 1
        %s337 = scalar_lea.vmem %s1, %s336
        %p338 = pneg %p72
        %p339 = pneg %p69
        %p340 = pneg %p93
        %p341 = pneg %p90
        %p342 = pneg %p114
        %p343 = pneg %p111
        %p344 = pneg %p135
        %p345 = pneg %p132
        %p346 = pneg %p156
        %p347 = pneg %p153
        %p348 = pneg %p177
        %p349 = pneg %p174
        %p350 = pneg %p198
        %p351 = pneg %p195
        %p352 = pneg %p219
        %p353 = pneg %p216
        %p354 = pneg %p245
        %p355 = pneg %p242
        %s356 = sand.u32 %s232, 1
        %s357 = scalar_lea.sflag [#allocation3], %s356
        %s358 = sand.u32 %s232, 1
        %s359 = scalar_lea.vmem [#allocation2], %s358
        %p360 = pneg %p271
        %p361 = pneg %p268
        %p362 = scmp.lt.s32.totalorder %s25, 1
        %s363 = scalar_select %p362, %s25, 1
        %s364 = smul.addr %s363, 4
        %s365 = scalar_lea.vmem %s10, %s364
        %p366 = scmp.lt.s32.totalorder %s25, 1
        %s367 = scalar_select %p366, %s25, 1
        %s368 = scalar_lea.vmem %s0, %s367
        %p369 = scmp.lt.s32.totalorder %s25, 1
        %s370 = scalar_select %p369, %s25, 1
        %s371 = scalar_lea.vmem %s1, %s370
        %p372 = scmp.lt.s32.totalorder %s25, 1
        %s373 = scalar_select %p372, %s25, 1
        %s374 = smul.addr %s373, 4
        %s375 = scalar_lea.vmem %s10, %s374
        %v376 = vld [vmem:[%s368] sm:$0x1]
        %v377 = vld [vmem:[%s371] sm:$0x1]
        %v378 = vld [vmem:[%s2] sm:$0xff]
        %v379 = vld [vmem:[%s2 + $0x8] sm:$0xff]
        %v380 = vld [vmem:[%s2 + $0x10] sm:$0xff]
        %v381 = vld [vmem:[%s2 + $0x18] sm:$0xff]
        %vm382 = vcmask 261120
        %v384 = vsel %vm382, %v376, 0
        %386 = vmatprep.subr.mxu0 0.0
        %387 = vmatpush1.msra.mxu0 %v378
        %388 = vmatprep.subr.mxu0 0.0
        %389 = vmatpush1.msra.mxu0 %v379
        %390 = vmatprep.subr.mxu0 0.0
        %391 = vmatpush1.msra.mxu0 %v380
        %392 = vmatprep.subr.mxu0 0.0
        %393 = vmatpush1.msra.mxu0 %v381
        %394 = vmatprep.subr.mxu0 0.0
        %395 = vmatpush1.msra.mxu0 0.0
        %396 = vmatprep.subr.mxu0 0.0
        %397 = vmatpush1.msra.mxu0 0.0
        %398 = vmatprep.subr.mxu0 0.0
        %399 = vmatpush1.msra.mxu0 0.0
        %400 = vmatprep.subr.mxu0 0.0
        %401 = vmatpush1.msra.mxu0 0.0
        %402 = vmatprep.subr.mxu0 0.0
        %403 = vmatpush1.msra.mxu0 0.0
        %404 = vmatprep.subr.mxu0 0.0
        %405 = vmatpush1.msra.mxu0 0.0
        %406 = vmatprep.subr.mxu0 0.0
        %407 = vmatpush1.msra.mxu0 0.0
        %408 = vmatprep.subr.mxu0 0.0
        %409 = vmatpush1.msra.mxu0 0.0
        %410 = vmatprep.subr.mxu0 0.0
        %411 = vmatpush1.msra.mxu0 0.0
        %412 = vmatprep.subr.mxu0 0.0
        %413 = vmatpush1.msra.mxu0 0.0
        %414 = vmatprep.subr.mxu0 0.0
        %415 = vmatpush1.msra.mxu0 0.0
        %416 = vmatprep.subr.mxu0 0.0
        %417 = vmatpush1.msra.mxu0 0.0
        %418 = vmatprep.subr.mxu0 0.0
        %419 = vmatpush1.msra.mxu0 0.0
        %420 = vmatprep.subr.mxu0 0.0
        %421 = vmatpush1.msra.mxu0 0.0
        %422 = vmatprep.subr.mxu0 0.0
        %423 = vmatpush1.msra.mxu0 0.0
        %424 = vmatprep.subr.mxu0 0.0
        %425 = vmatpush1.msra.mxu0 0.0
        %426 = vmatprep.subr.mxu0 0.0
        %427 = vmatpush1.msra.mxu0 0.0
        %428 = vmatprep.subr.mxu0 0.0
        %429 = vmatpush1.msra.mxu0 0.0
        %430 = vmatprep.subr.mxu0 0.0
        %431 = vmatpush1.msra.mxu0 0.0
        %432 = vmatprep.subr.mxu0 0.0
        %433 = vmatpush1.msra.mxu0 0.0
        %434 = vmatprep.subr.mxu0 0.0
        %435 = vmatpush1.msra.mxu0 0.0
        %436 = vmatprep.subr.mxu0 0.0
        %437 = vmatpush1.msra.mxu0 0.0
        %438 = vmatprep.subr.mxu0 0.0
        %439 = vmatpush1.msra.mxu0 0.0
        %440 = vmatprep.subr.mxu0 0.0
        %441 = vmatpush1.msra.mxu0 0.0
        %442 = vmatprep.subr.mxu0 0.0
        %443 = vmatpush1.msra.mxu0 0.0
        %444 = vmatprep.subr.mxu0 0.0
        %445 = vmatpush1.msra.mxu0 0.0
        %446 = vmatprep.subr.mxu0 0.0
        %447 = vmatpush1.msra.mxu0 0.0
        %448 = vmatprep.subr.mxu0 0.0
        %449 = vmatpush1.msra.mxu0 0.0
        %450 = vmatprep.mubr.f32.mxu0 0.0
        %451 = vmatmul.mubr.f32.gmra.mrb[0].mxu0 %v384
        %v452 = vpop.f32.mrb[0].mxu0
        %v453 = vadd.f32 0.0, %v452
        %v454 = vpop.f32.mrb[0].mxu0
        %455 = vdwg.mxu0
        %v456 = vmul.f32 %v453, 0.35355338
        %v457 = vld [vmem:[%s3] sm:$0xff]
        %v458 = vld [vmem:[%s3 + $0x8] sm:$0xff]
        %v459 = vld [vmem:[%s3 + $0x10] sm:$0xff]
        %v460 = vld [vmem:[%s3 + $0x18] sm:$0xff]
        %v462 = vsel %vm382, %v377, 0
        %464 = vmatprep.subr.mxu0 0.0
        %465 = vmatpush1.msra.mxu0 %v457
        %466 = vmatprep.subr.mxu0 0.0
        %467 = vmatpush1.msra.mxu0 %v458
        %468 = vmatprep.subr.mxu0 0.0
        %469 = vmatpush1.msra.mxu0 %v459
        %470 = vmatprep.subr.mxu0 0.0
        %471 = vmatpush1.msra.mxu0 %v460
        %472 = vmatprep.subr.mxu0 0.0
        %473 = vmatpush1.msra.mxu0 0.0
        %474 = vmatprep.subr.mxu0 0.0
        %475 = vmatpush1.msra.mxu0 0.0
        %476 = vmatprep.subr.mxu0 0.0
        %477 = vmatpush1.msra.mxu0 0.0
        %478 = vmatprep.subr.mxu0 0.0
        %479 = vmatpush1.msra.mxu0 0.0
        %480 = vmatprep.subr.mxu0 0.0
        %481 = vmatpush1.msra.mxu0 0.0
        %482 = vmatprep.subr.mxu0 0.0
        %483 = vmatpush1.msra.mxu0 0.0
        %484 = vmatprep.subr.mxu0 0.0
        %485 = vmatpush1.msra.mxu0 0.0
        %486 = vmatprep.subr.mxu0 0.0
        %487 = vmatpush1.msra.mxu0 0.0
        %488 = vmatprep.subr.mxu0 0.0
        %489 = vmatpush1.msra.mxu0 0.0
        %490 = vmatprep.subr.mxu0 0.0
        %491 = vmatpush1.msra.mxu0 0.0
        %492 = vmatprep.subr.mxu0 0.0
        %493 = vmatpush1.msra.mxu0 0.0
        %494 = vmatprep.subr.mxu0 0.0
        %495 = vmatpush1.msra.mxu0 0.0
        %496 = vmatprep.subr.mxu0 0.0
        %497 = vmatpush1.msra.mxu0 0.0
        %498 = vmatprep.subr.mxu0 0.0
        %499 = vmatpush1.msra.mxu0 0.0
        %500 = vmatprep.subr.mxu0 0.0
        %501 = vmatpush1.msra.mxu0 0.0
        %502 = vmatprep.subr.mxu0 0.0
        %503 = vmatpush1.msra.mxu0 0.0
        %504 = vmatprep.subr.mxu0 0.0
        %505 = vmatpush1.msra.mxu0 0.0
        %506 = vmatprep.subr.mxu0 0.0
        %507 = vmatpush1.msra.mxu0 0.0
        %508 = vmatprep.subr.mxu0 0.0
        %509 = vmatpush1.msra.mxu0 0.0
        %510 = vmatprep.subr.mxu0 0.0
        %511 = vmatpush1.msra.mxu0 0.0
        %512 = vmatprep.subr.mxu0 0.0
        %513 = vmatpush1.msra.mxu0 0.0
        %514 = vmatprep.subr.mxu0 0.0
        %515 = vmatpush1.msra.mxu0 0.0
        %516 = vmatprep.subr.mxu0 0.0
        %517 = vmatpush1.msra.mxu0 0.0
        %518 = vmatprep.subr.mxu0 0.0
        %519 = vmatpush1.msra.mxu0 0.0
        %520 = vmatprep.subr.mxu0 0.0
        %521 = vmatpush1.msra.mxu0 0.0
        %522 = vmatprep.subr.mxu0 0.0
        %523 = vmatpush1.msra.mxu0 0.0
        %524 = vmatprep.subr.mxu0 0.0
        %525 = vmatpush1.msra.mxu0 0.0
        %526 = vmatprep.subr.mxu0 0.0
        %527 = vmatpush1.msra.mxu0 0.0
        %528 = vmatprep.mubr.f32.mxu0 0.0
        %529 = vmatmul.mubr.f32.gmra.mrb[0].mxu0 %v462
        %v530 = vpop.f32.mrb[0].mxu0
        %v531 = vadd.f32 0.0, %v530
        %v532 = vpop.f32.mrb[0].mxu0
        %533 = vdwg.mxu0
        %v534 = vmul.f32 %v456, %v531
        %vm535 = vcmask 57344
        %v536 = vsel %vm535, %v534, 0.0
        %537 = vadd.xlane.f32.xlu0 %v536
        %v538 = vpop.xlane.xlu0 %537
        %v539 = vsub.f32 %v538, %v538
        %v540 = vmul.f32 %v539, 1.442695
        %v541 = vpow.pop %v540
        %v542 = vadd.f32 %v541, 0.0
        %v543 = vrcp.pop %v542
        %v544 = vmul.f32 %v541, %v543
        %vm545 = vcmask 0
        %546 = vst.msk [vmem:[%s375] sm:$0x1] %vm545, %v544
        %548 = vrot.lane.b32.xlu0 %v531, 96
        %v549 = vpop.permute.xlu0 %548
        %vm550 = vcmask 7168
        %v552 = vsel %vm550, %v544, 0
        %vm554 = vcmask 1040384
        %v555 = vsel %vm554, %v549, 0
        %557 = vmatprep.subr.mxu0 0.0
        %558 = vmatpush1.msra.mxu0 %v555
        %559 = vmatprep.subr.mxu0 0.0
        %560 = vmatpush1.msra.mxu0 0.0
        %561 = vmatprep.subr.mxu0 0.0
        %562 = vmatpush1.msra.mxu0 0.0
        %563 = vmatprep.subr.mxu0 0.0
        %564 = vmatpush1.msra.mxu0 0.0
        %565 = vmatprep.subr.mxu0 0.0
        %566 = vmatpush1.msra.mxu0 0.0
        %567 = vmatprep.subr.mxu0 0.0
        %568 = vmatpush1.msra.mxu0 0.0
        %569 = vmatprep.subr.mxu0 0.0
        %570 = vmatpush1.msra.mxu0 0.0
        %571 = vmatprep.subr.mxu0 0.0
        %572 = vmatpush1.msra.mxu0 0.0
        %573 = vmatprep.subr.mxu0 0.0
        %574 = vmatpush1.msra.mxu0 0.0
        %575 = vmatprep.subr.mxu0 0.0
        %576 = vmatpush1.msra.mxu0 0.0
        %577 = vmatprep.subr.mxu0 0.0
        %578 = vmatpush1.msra.mxu0 0.0
        %579 = vmatprep.subr.mxu0 0.0
        %580 = vmatpush1.msra.mxu0 0.0
        %581 = vmatprep.subr.mxu0 0.0
        %582 = vmatpush1.msra.mxu0 0.0
        %583 = vmatprep.subr.mxu0 0.0
        %584 = vmatpush1.msra.mxu0 0.0
        %585 = vmatprep.subr.mxu0 0.0
        %586 = vmatpush1.msra.mxu0 0.0
        %587 = vmatprep.subr.mxu0 0.0
        %588 = vmatpush1.msra.mxu0 0.0
        %589 = vmatprep.subr.mxu0 0.0
        %590 = vmatpush1.msra.mxu0 0.0
        %591 = vmatprep.subr.mxu0 0.0
        %592 = vmatpush1.msra.mxu0 0.0
        %593 = vmatprep.subr.mxu0 0.0
        %594 = vmatpush1.msra.mxu0 0.0
        %595 = vmatprep.subr.mxu0 0.0
        %596 = vmatpush1.msra.mxu0 0.0
        %597 = vmatprep.subr.mxu0 0.0
        %598 = vmatpush1.msra.mxu0 0.0
        %599 = vmatprep.subr.mxu0 0.0
        %600 = vmatpush1.msra.mxu0 0.0
        %601 = vmatprep.subr.mxu0 0.0
        %602 = vmatpush1.msra.mxu0 0.0
        %603 = vmatprep.subr.mxu0 0.0
        %604 = vmatpush1.msra.mxu0 0.0
        %605 = vmatprep.subr.mxu0 0.0
        %606 = vmatpush1.msra.mxu0 0.0
        %607 = vmatprep.subr.mxu0 0.0
        %608 = vmatpush1.msra.mxu0 0.0
        %609 = vmatprep.subr.mxu0 0.0
        %610 = vmatpush1.msra.mxu0 0.0
        %611 = vmatprep.subr.mxu0 0.0
        %612 = vmatpush1.msra.mxu0 0.0
        %613 = vmatprep.subr.mxu0 0.0
        %614 = vmatpush1.msra.mxu0 0.0
        %615 = vmatprep.subr.mxu0 0.0
        %616 = vmatpush1.msra.mxu0 0.0
        %617 = vmatprep.subr.mxu0 0.0
        %618 = vmatpush1.msra.mxu0 0.0
        %619 = vmatprep.subr.mxu0 0.0
        %620 = vmatpush1.msra.mxu0 0.0
        %621 = vmatprep.mubr.f32.mxu0 0.0
        %622 = vmatmul.mubr.f32.gmra.mrb[0].mxu0 %v552
        %v623 = vpop.f32.mrb[0].mxu0
        %v624 = vadd.f32 0.0, %v623
        %v625 = vpop.f32.mrb[0].mxu0
        %626 = vdwg.mxu0
        %v627 = vld [vmem:[%s4] sm:$0xff]
        %629 = vrot.lane.b32.xlu0 %v534, 120
        %v630 = vpop.permute.xlu0 %629
        %v632 = vsel %vm535, %v630, 0.0
        %633 = vadd.xlane.f32.xlu0 %v632
        %v634 = vpop.xlane.xlu0 %633
        %v635 = vsub.f32 %v634, %v634
        %v636 = vmul.f32 %v635, 1.442695
        %v637 = vpow.pop %v636
        %v638 = vadd.f32 %v637, 0.0
        %v639 = vrcp.pop %v638
        %v640 = vmul.f32 %v637, %v639
        %s641 = scalar_lea.vmem %s375, 1
        %642 = vst.msk [vmem:[%s641] sm:$0x1] %vm545, %v640
        %643 = vrot.lane.b32.xlu0 %v531, 88
        %v644 = vpop.permute.xlu0 %643
        %v646 = vsel %vm550, %v640, 0
        %v648 = vsel %vm554, %v644, 0
        %650 = vmatprep.subr.mxu0 0.0
        %651 = vmatpush1.msra.mxu0 %v648
        %652 = vmatprep.subr.mxu0 0.0
        %653 = vmatpush1.msra.mxu0 0.0
        %654 = vmatprep.subr.mxu0 0.0
        %655 = vmatpush1.msra.mxu0 0.0
        %656 = vmatprep.subr.mxu0 0.0
        %657 = vmatpush1.msra.mxu0 0.0
        %658 = vmatprep.subr.mxu0 0.0
        %659 = vmatpush1.msra.mxu0 0.0
        %660 = vmatprep.subr.mxu0 0.0
        %661 = vmatpush1.msra.mxu0 0.0
        %662 = vmatprep.subr.mxu0 0.0
        %663 = vmatpush1.msra.mxu0 0.0
        %664 = vmatprep.subr.mxu0 0.0
        %665 = vmatpush1.msra.mxu0 0.0
        %666 = vmatprep.subr.mxu0 0.0
        %667 = vmatpush1.msra.mxu0 0.0
        %668 = vmatprep.subr.mxu0 0.0
        %669 = vmatpush1.msra.mxu0 0.0
        %670 = vmatprep.subr.mxu0 0.0
        %671 = vmatpush1.msra.mxu0 0.0
        %672 = vmatprep.subr.mxu0 0.0
        %673 = vmatpush1.msra.mxu0 0.0
        %674 = vmatprep.subr.mxu0 0.0
        %675 = vmatpush1.msra.mxu0 0.0
        %676 = vmatprep.subr.mxu0 0.0
        %677 = vmatpush1.msra.mxu0 0.0
        %678 = vmatprep.subr.mxu0 0.0
        %679 = vmatpush1.msra.mxu0 0.0
        %680 = vmatprep.subr.mxu0 0.0
        %681 = vmatpush1.msra.mxu0 0.0
        %682 = vmatprep.subr.mxu0 0.0
        %683 = vmatpush1.msra.mxu0 0.0
        %684 = vmatprep.subr.mxu0 0.0
        %685 = vmatpush1.msra.mxu0 0.0
        %686 = vmatprep.subr.mxu0 0.0
        %687 = vmatpush1.msra.mxu0 0.0
        %688 = vmatprep.subr.mxu0 0.0
        %689 = vmatpush1.msra.mxu0 0.0
        %690 = vmatprep.subr.mxu0 0.0
        %691 = vmatpush1.msra.mxu0 0.0
        %692 = vmatprep.subr.mxu0 0.0
        %693 = vmatpush1.msra.mxu0 0.0
        %694 = vmatprep.subr.mxu0 0.0
        %695 = vmatpush1.msra.mxu0 0.0
        %696 = vmatprep.subr.mxu0 0.0
        %697 = vmatpush1.msra.mxu0 0.0
        %698 = vmatprep.subr.mxu0 0.0
        %699 = vmatpush1.msra.mxu0 0.0
        %700 = vmatprep.subr.mxu0 0.0
        %701 = vmatpush1.msra.mxu0 0.0
        %702 = vmatprep.subr.mxu0 0.0
        %703 = vmatpush1.msra.mxu0 0.0
        %704 = vmatprep.subr.mxu0 0.0
        %705 = vmatpush1.msra.mxu0 0.0
        %706 = vmatprep.subr.mxu0 0.0
        %707 = vmatpush1.msra.mxu0 0.0
        %708 = vmatprep.subr.mxu0 0.0
        %709 = vmatpush1.msra.mxu0 0.0
        %710 = vmatprep.subr.mxu0 0.0
        %711 = vmatpush1.msra.mxu0 0.0
        %712 = vmatprep.subr.mxu0 0.0
        %713 = vmatpush1.msra.mxu0 0.0
        %714 = vmatprep.mubr.f32.mxu0 0.0
        %715 = vmatmul.mubr.f32.gmra.mrb[0].mxu0 %v646
        %v716 = vpop.f32.mrb[0].mxu0
        %v717 = vadd.f32 0.0, %v716
        %v718 = vpop.f32.mrb[0].mxu0
        %719 = vdwg.mxu0
        %v720 = vld [vmem:[%s4 + $0x8] sm:$0xff]
        %vm721 = vcmask 64512
        %v723 = vsel %vm721, %v717, 0
        %725 = vmatprep.subr.mxu0 0.0
        %726 = vmatpush1.msra.mxu0 %v720
        %727 = vmatprep.subr.mxu0 0.0
        %728 = vmatpush1.msra.mxu0 0.0
        %729 = vmatprep.subr.mxu0 0.0
        %730 = vmatpush1.msra.mxu0 0.0
        %731 = vmatprep.subr.mxu0 0.0
        %732 = vmatpush1.msra.mxu0 0.0
        %733 = vmatprep.subr.mxu0 0.0
        %734 = vmatpush1.msra.mxu0 0.0
        %735 = vmatprep.subr.mxu0 0.0
        %736 = vmatpush1.msra.mxu0 0.0
        %737 = vmatprep.subr.mxu0 0.0
        %738 = vmatpush1.msra.mxu0 0.0
        %739 = vmatprep.subr.mxu0 0.0
        %740 = vmatpush1.msra.mxu0 0.0
        %741 = vmatprep.subr.mxu0 0.0
        %742 = vmatpush1.msra.mxu0 0.0
        %743 = vmatprep.subr.mxu0 0.0
        %744 = vmatpush1.msra.mxu0 0.0
        %745 = vmatprep.subr.mxu0 0.0
        %746 = vmatpush1.msra.mxu0 0.0
        %747 = vmatprep.subr.mxu0 0.0
        %748 = vmatpush1.msra.mxu0 0.0
        %749 = vmatprep.subr.mxu0 0.0
        %750 = vmatpush1.msra.mxu0 0.0
        %751 = vmatprep.subr.mxu0 0.0
        %752 = vmatpush1.msra.mxu0 0.0
        %753 = vmatprep.subr.mxu0 0.0
        %754 = vmatpush1.msra.mxu0 0.0
        %755 = vmatprep.subr.mxu0 0.0
        %756 = vmatpush1.msra.mxu0 0.0
        %757 = vmatprep.subr.mxu0 0.0
        %758 = vmatpush1.msra.mxu0 0.0
        %759 = vmatprep.subr.mxu0 0.0
        %760 = vmatpush1.msra.mxu0 0.0
        %761 = vmatprep.subr.mxu0 0.0
        %762 = vmatpush1.msra.mxu0 0.0
        %763 = vmatprep.subr.mxu0 0.0
        %764 = vmatpush1.msra.mxu0 0.0
        %765 = vmatprep.subr.mxu0 0.0
        %766 = vmatpush1.msra.mxu0 0.0
        %767 = vmatprep.subr.mxu0 0.0
        %768 = vmatpush1.msra.mxu0 0.0
        %769 = vmatprep.subr.mxu0 0.0
        %770 = vmatpush1.msra.mxu0 0.0
        %771 = vmatprep.subr.mxu0 0.0
        %772 = vmatpush1.msra.mxu0 0.0
        %773 = vmatprep.subr.mxu0 0.0
        %774 = vmatpush1.msra.mxu0 0.0
        %775 = vmatprep.subr.mxu0 0.0
        %776 = vmatpush1.msra.mxu0 0.0
        %777 = vmatprep.subr.mxu0 0.0
        %778 = vmatpush1.msra.mxu0 0.0
        %779 = vmatprep.subr.mxu0 0.0
        %780 = vmatpush1.msra.mxu0 0.0
        %781 = vmatprep.subr.mxu0 0.0
        %782 = vmatpush1.msra.mxu0 0.0
        %783 = vmatprep.subr.mxu0 0.0
        %784 = vmatpush1.msra.mxu0 0.0
        %785 = vmatprep.subr.mxu0 0.0
        %786 = vmatpush1.msra.mxu0 0.0
        %787 = vmatprep.subr.mxu0 0.0
        %788 = vmatpush1.msra.mxu0 0.0
        %789 = vmatprep.mubr.f32.mxu0 0.0
        %790 = vmatmul.mubr.f32.gmra.mrb[0].mxu0 %v723
        %v791 = vpop.f32.mrb[0].mxu0
        %v792 = vadd.f32 0.0, %v791
        %v793 = vpop.f32.mrb[0].mxu0
        %794 = vdwg.mxu0
        %v796 = vsel %vm721, %v624, 0
        %798 = vmatprep.subr.mxu0 0.0
        %799 = vmatpush1.msra.mxu0 %v627
        %800 = vmatprep.subr.mxu0 0.0
        %801 = vmatpush1.msra.mxu0 0.0
        %802 = vmatprep.subr.mxu0 0.0
        %803 = vmatpush1.msra.mxu0 0.0
        %804 = vmatprep.subr.mxu0 0.0
        %805 = vmatpush1.msra.mxu0 0.0
        %806 = vmatprep.subr.mxu0 0.0
        %807 = vmatpush1.msra.mxu0 0.0
        %808 = vmatprep.subr.mxu0 0.0
        %809 = vmatpush1.msra.mxu0 0.0
        %810 = vmatprep.subr.mxu0 0.0
        %811 = vmatpush1.msra.mxu0 0.0
        %812 = vmatprep.subr.mxu0 0.0
        %813 = vmatpush1.msra.mxu0 0.0
        %814 = vmatprep.subr.mxu0 0.0
        %815 = vmatpush1.msra.mxu0 0.0
        %816 = vmatprep.subr.mxu0 0.0
        %817 = vmatpush1.msra.mxu0 0.0
        %818 = vmatprep.subr.mxu0 0.0
        %819 = vmatpush1.msra.mxu0 0.0
        %820 = vmatprep.subr.mxu0 0.0
        %821 = vmatpush1.msra.mxu0 0.0
        %822 = vmatprep.subr.mxu0 0.0
        %823 = vmatpush1.msra.mxu0 0.0
        %824 = vmatprep.subr.mxu0 0.0
        %825 = vmatpush1.msra.mxu0 0.0
        %826 = vmatprep.subr.mxu0 0.0
        %827 = vmatpush1.msra.mxu0 0.0
        %828 = vmatprep.subr.mxu0 0.0
        %829 = vmatpush1.msra.mxu0 0.0
        %830 = vmatprep.subr.mxu0 0.0
        %831 = vmatpush1.msra.mxu0 0.0
        %832 = vmatprep.subr.mxu0 0.0
        %833 = vmatpush1.msra.mxu0 0.0
        %834 = vmatprep.subr.mxu0 0.0
        %835 = vmatpush1.msra.mxu0 0.0
        %836 = vmatprep.subr.mxu0 0.0
        %837 = vmatpush1.msra.mxu0 0.0
        %838 = vmatprep.subr.mxu0 0.0
        %839 = vmatpush1.msra.mxu0 0.0
        %840 = vmatprep.subr.mxu0 0.0
        %841 = vmatpush1.msra.mxu0 0.0
        %842 = vmatprep.subr.mxu0 0.0
        %843 = vmatpush1.msra.mxu0 0.0
        %844 = vmatprep.subr.mxu0 0.0
        %845 = vmatpush1.msra.mxu0 0.0
        %846 = vmatprep.subr.mxu0 0.0
        %847 = vmatpush1.msra.mxu0 0.0
        %848 = vmatprep.subr.mxu0 0.0
        %849 = vmatpush1.msra.mxu0 0.0
        %850 = vmatprep.subr.mxu0 0.0
        %851 = vmatpush1.msra.mxu0 0.0
        %852 = vmatprep.subr.mxu0 0.0
        %853 = vmatpush1.msra.mxu0 0.0
        %854 = vmatprep.subr.mxu0 0.0
        %855 = vmatpush1.msra.mxu0 0.0
        %856 = vmatprep.subr.mxu0 0.0
        %857 = vmatpush1.msra.mxu0 0.0
        %858 = vmatprep.subr.mxu0 0.0
        %859 = vmatpush1.msra.mxu0 0.0
        %860 = vmatprep.subr.mxu0 0.0
        %861 = vmatpush1.msra.mxu0 0.0
        %862 = vmatprep.mubr.f32.mxu0 0.0
        %863 = vmatmul.mubr.f32.gmra.mrb[0].mxu0 %v796
        %v864 = vpop.f32.mrb[0].mxu0
        %v865 = vadd.f32 %v792, %v864
        %v866 = vpop.f32.mrb[0].mxu0
        %867 = vdwg.mxu0
        %868 = vrot.lane.b32.xlu0 %v534, 112
        %v869 = vpop.permute.xlu0 %868
        %v871 = vsel %vm535, %v869, 0.0
        %872 = vadd.xlane.f32.xlu0 %v871
        %v873 = vpop.xlane.xlu0 %872
        %v874 = vsub.f32 %v873, %v873
        %v875 = vmul.f32 %v874, 1.442695
        %v876 = vpow.pop %v875
        %v877 = vadd.f32 %v876, 0.0
        %v878 = vrcp.pop %v877
        %v879 = vmul.f32 %v876, %v878
        %s880 = scalar_lea.vmem %s375, 2
        %881 = vst.msk [vmem:[%s880] sm:$0x1] %vm545, %v879
        %882 = vrot.lane.b32.xlu0 %v531, 80
        %v883 = vpop.permute.xlu0 %882
        %v885 = vsel %vm550, %v879, 0
        %v887 = vsel %vm554, %v883, 0
        %889 = vmatprep.subr.mxu0 0.0
        %890 = vmatpush1.msra.mxu0 %v887
        %891 = vmatprep.subr.mxu0 0.0
        %892 = vmatpush1.msra.mxu0 0.0
        %893 = vmatprep.subr.mxu0 0.0
        %894 = vmatpush1.msra.mxu0 0.0
        %895 = vmatprep.subr.mxu0 0.0
        %896 = vmatpush1.msra.mxu0 0.0
        %897 = vmatprep.subr.mxu0 0.0
        %898 = vmatpush1.msra.mxu0 0.0
        %899 = vmatprep.subr.mxu0 0.0
        %900 = vmatpush1.msra.mxu0 0.0
        %901 = vmatprep.subr.mxu0 0.0
        %902 = vmatpush1.msra.mxu0 0.0
        %903 = vmatprep.subr.mxu0 0.0
        %904 = vmatpush1.msra.mxu0 0.0
        %905 = vmatprep.subr.mxu0 0.0
        %906 = vmatpush1.msra.mxu0 0.0
        %907 = vmatprep.subr.mxu0 0.0
        %908 = vmatpush1.msra.mxu0 0.0
        %909 = vmatprep.subr.mxu0 0.0
        %910 = vmatpush1.msra.mxu0 0.0
        %911 = vmatprep.subr.mxu0 0.0
        %912 = vmatpush1.msra.mxu0 0.0
        %913 = vmatprep.subr.mxu0 0.0
        %914 = vmatpush1.msra.mxu0 0.0
        %915 = vmatprep.subr.mxu0 0.0
        %916 = vmatpush1.msra.mxu0 0.0
        %917 = vmatprep.subr.mxu0 0.0
        %918 = vmatpush1.msra.mxu0 0.0
        %919 = vmatprep.subr.mxu0 0.0
        %920 = vmatpush1.msra.mxu0 0.0
        %921 = vmatprep.subr.mxu0 0.0
        %922 = vmatpush1.msra.mxu0 0.0
        %923 = vmatprep.subr.mxu0 0.0
        %924 = vmatpush1.msra.mxu0 0.0
        %925 = vmatprep.subr.mxu0 0.0
        %926 = vmatpush1.msra.mxu0 0.0
        %927 = vmatprep.subr.mxu0 0.0
        %928 = vmatpush1.msra.mxu0 0.0
        %929 = vmatprep.subr.mxu0 0.0
        %930 = vmatpush1.msra.mxu0 0.0
        %931 = vmatprep.subr.mxu0 0.0
        %932 = vmatpush1.msra.mxu0 0.0
        %933 = vmatprep.subr.mxu0 0.0
        %934 = vmatpush1.msra.mxu0 0.0
        %935 = vmatprep.subr.mxu0 0.0
        %936 = vmatpush1.msra.mxu0 0.0
        %937 = vmatprep.subr.mxu0 0.0
        %938 = vmatpush1.msra.mxu0 0.0
        %939 = vmatprep.subr.mxu0 0.0
        %940 = vmatpush1.msra.mxu0 0.0
        %941 = vmatprep.subr.mxu0 0.0
        %942 = vmatpush1.msra.mxu0 0.0
        %943 = vmatprep.subr.mxu0 0.0
        %944 = vmatpush1.msra.mxu0 0.0
        %945 = vmatprep.subr.mxu0 0.0
        %946 = vmatpush1.msra.mxu0 0.0
        %947 = vmatprep.subr.mxu0 0.0
        %948 = vmatpush1.msra.mxu0 0.0
        %949 = vmatprep.subr.mxu0 0.0
        %950 = vmatpush1.msra.mxu0 0.0
        %951 = vmatprep.subr.mxu0 0.0
        %952 = vmatpush1.msra.mxu0 0.0
        %953 = vmatprep.mubr.f32.mxu0 0.0
        %954 = vmatmul.mubr.f32.gmra.mrb[0].mxu0 %v885
        %v955 = vpop.f32.mrb[0].mxu0
        %v956 = vadd.f32 0.0, %v955
        %v957 = vpop.f32.mrb[0].mxu0
        %958 = vdwg.mxu0
        %v959 = vld [vmem:[%s4 + $0x10] sm:$0xff]
        %v961 = vsel %vm721, %v956, 0
        %963 = vmatprep.subr.mxu0 0.0
        %964 = vmatpush1.msra.mxu0 %v959
        %965 = vmatprep.subr.mxu0 0.0
        %966 = vmatpush1.msra.mxu0 0.0
        %967 = vmatprep.subr.mxu0 0.0
        %968 = vmatpush1.msra.mxu0 0.0
        %969 = vmatprep.subr.mxu0 0.0
        %970 = vmatpush1.msra.mxu0 0.0
        %971 = vmatprep.subr.mxu0 0.0
        %972 = vmatpush1.msra.mxu0 0.0
        %973 = vmatprep.subr.mxu0 0.0
        %974 = vmatpush1.msra.mxu0 0.0
        %975 = vmatprep.subr.mxu0 0.0
        %976 = vmatpush1.msra.mxu0 0.0
        %977 = vmatprep.subr.mxu0 0.0
        %978 = vmatpush1.msra.mxu0 0.0
        %979 = vmatprep.subr.mxu0 0.0
        %980 = vmatpush1.msra.mxu0 0.0
        %981 = vmatprep.subr.mxu0 0.0
        %982 = vmatpush1.msra.mxu0 0.0
        %983 = vmatprep.subr.mxu0 0.0
        %984 = vmatpush1.msra.mxu0 0.0
        %985 = vmatprep.subr.mxu0 0.0
        %986 = vmatpush1.msra.mxu0 0.0
        %987 = vmatprep.subr.mxu0 0.0
        %988 = vmatpush1.msra.mxu0 0.0
        %989 = vmatprep.subr.mxu0 0.0
        %990 = vmatpush1.msra.mxu0 0.0
        %991 = vmatprep.subr.mxu0 0.0
        %992 = vmatpush1.msra.mxu0 0.0
        %993 = vmatprep.subr.mxu0 0.0
        %994 = vmatpush1.msra.mxu0 0.0
        %995 = vmatprep.subr.mxu0 0.0
        %996 = vmatpush1.msra.mxu0 0.0
        %997 = vmatprep.subr.mxu0 0.0
        %998 = vmatpush1.msra.mxu0 0.0
        %999 = vmatprep.subr.mxu0 0.0
        %1000 = vmatpush1.msra.mxu0 0.0
        %1001 = vmatprep.subr.mxu0 0.0
        %1002 = vmatpush1.msra.mxu0 0.0
        %1003 = vmatprep.subr.mxu0 0.0
        %1004 = vmatpush1.msra.mxu0 0.0
        %1005 = vmatprep.subr.mxu0 0.0
        %1006 = vmatpush1.msra.mxu0 0.0
        %1007 = vmatprep.subr.mxu0 0.0
        %1008 = vmatpush1.msra.mxu0 0.0
        %1009 = vmatprep.subr.mxu0 0.0
        %1010 = vmatpush1.msra.mxu0 0.0
        %1011 = vmatprep.subr.mxu0 0.0
        %1012 = vmatpush1.msra.mxu0 0.0
        %1013 = vmatprep.subr.mxu0 0.0
        %1014 = vmatpush1.msra.mxu0 0.0
        %1015 = vmatprep.subr.mxu0 0.0
        %1016 = vmatpush1.msra.mxu0 0.0
        %1017 = vmatprep.subr.mxu0 0.0
        %1018 = vmatpush1.msra.mxu0 0.0
        %1019 = vmatprep.subr.mxu0 0.0
        %1020 = vmatpush1.msra.mxu0 0.0
        %1021 = vmatprep.subr.mxu0 0.0
        %1022 = vmatpush1.msra.mxu0 0.0
        %1023 = vmatprep.subr.mxu0 0.0
        %1024 = vmatpush1.msra.mxu0 0.0
        %1025 = vmatprep.subr.mxu0 0.0
        %1026 = vmatpush1.msra.mxu0 0.0
        %1027 = vmatprep.mubr.f32.mxu0 0.0
        %1028 = vmatmul.mubr.f32.gmra.mrb[0].mxu0 %v961
        %v1029 = vpop.f32.mrb[0].mxu0
        %v1030 = vadd.f32 0.0, %v1029
        %v1031 = vpop.f32.mrb[0].mxu0
        %1032 = vdwg.mxu0
        %v1033 = vadd.f32 %v865, %v1030
        %1034 = vrot.lane.b32.xlu0 %v534, 104
        %v1035 = vpop.permute.xlu0 %1034
        %v1037 = vsel %vm535, %v1035, 0.0
        %1038 = vadd.xlane.f32.xlu0 %v1037
        %v1039 = vpop.xlane.xlu0 %1038
        %v1040 = vsub.f32 %v1039, %v1039
        %v1041 = vmul.f32 %v1040, 1.442695
        %v1042 = vpow.pop %v1041
        %v1043 = vadd.f32 %v1042, 0.0
        %v1044 = vrcp.pop %v1043
        %v1045 = vmul.f32 %v1042, %v1044
        %s1046 = scalar_lea.vmem %s375, 3
        %1047 = vst.msk [vmem:[%s1046] sm:$0x1] %vm545, %v1045
        %1048 = vrot.lane.b32.xlu0 %v531, 72
        %v1049 = vpop.permute.xlu0 %1048
        %v1051 = vsel %vm550, %v1045, 0
        %v1053 = vsel %vm554, %v1049, 0
        %1055 = vmatprep.subr.mxu0 0.0
        %1056 = vmatpush1.msra.mxu0 %v1053
        %1057 = vmatprep.subr.mxu0 0.0
        %1058 = vmatpush1.msra.mxu0 0.0
        %1059 = vmatprep.subr.mxu0 0.0
        %1060 = vmatpush1.msra.mxu0 0.0
        %1061 = vmatprep.subr.mxu0 0.0
        %1062 = vmatpush1.msra.mxu0 0.0
        %1063 = vmatprep.subr.mxu0 0.0
        %1064 = vmatpush1.msra.mxu0 0.0
        %1065 = vmatprep.subr.mxu0 0.0
        %1066 = vmatpush1.msra.mxu0 0.0
        %1067 = vmatprep.subr.mxu0 0.0
        %1068 = vmatpush1.msra.mxu0 0.0
        %1069 = vmatprep.subr.mxu0 0.0
        %1070 = vmatpush1.msra.mxu0 0.0
        %1071 = vmatprep.subr.mxu0 0.0
        %1072 = vmatpush1.msra.mxu0 0.0
        %1073 = vmatprep.subr.mxu0 0.0
        %1074 = vmatpush1.msra.mxu0 0.0
        %1075 = vmatprep.subr.mxu0 0.0
        %1076 = vmatpush1.msra.mxu0 0.0
        %1077 = vmatprep.subr.mxu0 0.0
        %1078 = vmatpush1.msra.mxu0 0.0
        %1079 = vmatprep.subr.mxu0 0.0
        %1080 = vmatpush1.msra.mxu0 0.0
        %1081 = vmatprep.subr.mxu0 0.0
        %1082 = vmatpush1.msra.mxu0 0.0
        %1083 = vmatprep.subr.mxu0 0.0
        %1084 = vmatpush1.msra.mxu0 0.0
        %1085 = vmatprep.subr.mxu0 0.0
        %1086 = vmatpush1.msra.mxu0 0.0
        %1087 = vmatprep.subr.mxu0 0.0
        %1088 = vmatpush1.msra.mxu0 0.0
        %1089 = vmatprep.subr.mxu0 0.0
        %1090 = vmatpush1.msra.mxu0 0.0
        %1091 = vmatprep.subr.mxu0 0.0
        %1092 = vmatpush1.msra.mxu0 0.0
        %1093 = vmatprep.subr.mxu0 0.0
        %1094 = vmatpush1.msra.mxu0 0.0
        %1095 = vmatprep.subr.mxu0 0.0
        %1096 = vmatpush1.msra.mxu0 0.0
        %1097 = vmatprep.subr.mxu0 0.0
        %1098 = vmatpush1.msra.mxu0 0.0
        %1099 = vmatprep.subr.mxu0 0.0
        %1100 = vmatpush1.msra.mxu0 0.0
        %1101 = vmatprep.subr.mxu0 0.0
        %1102 = vmatpush1.msra.mxu0 0.0
        %1103 = vmatprep.subr.mxu0 0.0
        %1104 = vmatpush1.msra.mxu0 0.0
        %1105 = vmatprep.subr.mxu0 0.0
        %1106 = vmatpush1.msra.mxu0 0.0
        %1107 = vmatprep.subr.mxu0 0.0
        %1108 = vmatpush1.msra.mxu0 0.0
        %1109 = vmatprep.subr.mxu0 0.0
        %1110 = vmatpush1.msra.mxu0 0.0
        %1111 = vmatprep.subr.mxu0 0.0
        %1112 = vmatpush1.msra.mxu0 0.0
        %1113 = vmatprep.subr.mxu0 0.0
        %1114 = vmatpush1.msra.mxu0 0.0
        %1115 = vmatprep.subr.mxu0 0.0
        %1116 = vmatpush1.msra.mxu0 0.0
        %1117 = vmatprep.subr.mxu0 0.0
        %1118 = vmatpush1.msra.mxu0 0.0
        %1119 = vmatprep.mubr.f32.mxu0 0.0
        %1120 = vmatmul.mubr.f32.gmra.mrb[0].mxu0 %v1051
        %v1121 = vpop.f32.mrb[0].mxu0
        %v1122 = vadd.f32 0.0, %v1121
        %v1123 = vpop.f32.mrb[0].mxu0
        %1124 = vdwg.mxu0
        %v1125 = vld [vmem:[%s4 + $0x18] sm:$0xff]
        %v1127 = vsel %vm721, %v1122, 0
        %1129 = vmatprep.subr.mxu0 0.0
        %1130 = vmatpush1.msra.mxu0 %v1125
        %1131 = vmatprep.subr.mxu0 0.0
        %1132 = vmatpush1.msra.mxu0 0.0
        %1133 = vmatprep.subr.mxu0 0.0
        %1134 = vmatpush1.msra.mxu0 0.0
        %1135 = vmatprep.subr.mxu0 0.0
        %1136 = vmatpush1.msra.mxu0 0.0
        %1137 = vmatprep.subr.mxu0 0.0
        %1138 = vmatpush1.msra.mxu0 0.0
        %1139 = vmatprep.subr.mxu0 0.0
        %1140 = vmatpush1.msra.mxu0 0.0
        %1141 = vmatprep.subr.mxu0 0.0
        %1142 = vmatpush1.msra.mxu0 0.0
        %1143 = vmatprep.subr.mxu0 0.0
        %1144 = vmatpush1.msra.mxu0 0.0
        %1145 = vmatprep.subr.mxu0 0.0
        %1146 = vmatpush1.msra.mxu0 0.0
        %1147 = vmatprep.subr.mxu0 0.0
        %1148 = vmatpush1.msra.mxu0 0.0
        %1149 = vmatprep.subr.mxu0 0.0
        %1150 = vmatpush1.msra.mxu0 0.0
        %1151 = vmatprep.subr.mxu0 0.0
        %1152 = vmatpush1.msra.mxu0 0.0
        %1153 = vmatprep.subr.mxu0 0.0
        %1154 = vmatpush1.msra.mxu0 0.0
        %1155 = vmatprep.subr.mxu0 0.0
        %1156 = vmatpush1.msra.mxu0 0.0
        %1157 = vmatprep.subr.mxu0 0.0
        %1158 = vmatpush1.msra.mxu0 0.0
        %1159 = vmatprep.subr.mxu0 0.0
        %1160 = vmatpush1.msra.mxu0 0.0
        %1161 = vmatprep.subr.mxu0 0.0
        %1162 = vmatpush1.msra.mxu0 0.0
        %1163 = vmatprep.subr.mxu0 0.0
        %1164 = vmatpush1.msra.mxu0 0.0
        %1165 = vmatprep.subr.mxu0 0.0
        %1166 = vmatpush1.msra.mxu0 0.0
        %1167 = vmatprep.subr.mxu0 0.0
        %1168 = vmatpush1.msra.mxu0 0.0
        %1169 = vmatprep.subr.mxu0 0.0
        %1170 = vmatpush1.msra.mxu0 0.0
        %1171 = vmatprep.subr.mxu0 0.0
        %1172 = vmatpush1.msra.mxu0 0.0
        %1173 = vmatprep.subr.mxu0 0.0
        %1174 = vmatpush1.msra.mxu0 0.0
        %1175 = vmatprep.subr.mxu0 0.0
        %1176 = vmatpush1.msra.mxu0 0.0
        %1177 = vmatprep.subr.mxu0 0.0
        %1178 = vmatpush1.msra.mxu0 0.0
        %1179 = vmatprep.subr.mxu0 0.0
        %1180 = vmatpush1.msra.mxu0 0.0
        %1181 = vmatprep.subr.mxu0 0.0
        %1182 = vmatpush1.msra.mxu0 0.0
        %1183 = vmatprep.subr.mxu0 0.0
        %1184 = vmatpush1.msra.mxu0 0.0
        %1185 = vmatprep.subr.mxu0 0.0
        %1186 = vmatpush1.msra.mxu0 0.0
        %1187 = vmatprep.subr.mxu0 0.0
        %1188 = vmatpush1.msra.mxu0 0.0
        %1189 = vmatprep.subr.mxu0 0.0
        %1190 = vmatpush1.msra.mxu0 0.0
        %1191 = vmatprep.subr.mxu0 0.0
        %1192 = vmatpush1.msra.mxu0 0.0
        %1193 = vmatprep.mubr.f32.mxu0 0.0
        %1194 = vmatmul.mubr.f32.gmra.mrb[0].mxu0 %v1127
        %v1195 = vpop.f32.mrb[0].mxu0
        %v1196 = vadd.f32 0.0, %v1195
        %v1197 = vpop.f32.mrb[0].mxu0
        %1198 = vdwg.mxu0
        %v1199 = vadd.f32 %v1033, %v1196
        %v1200 = vadd.f32 %v1199, %v376
        %v1201 = vld [vmem:[%s5] sm:$0xff]
        %v1202 = vld [vmem:[%s5 + $0x8] sm:$0xff]
        %v1203 = vld [vmem:[%s5 + $0x10] sm:$0xff]
        %v1204 = vld [vmem:[%s5 + $0x18] sm:$0xff]
        %v1205 = vld [vmem:[%s6] sm:$0x1]
        %v1207 = vsel %vm382, %v1200, 0
        %1209 = vmatprep.subr.mxu0 0.0
        %1210 = vmatpush1.msra.mxu0 %v1201
        %1211 = vmatprep.subr.mxu0 0.0
        %1212 = vmatpush1.msra.mxu0 %v1202
        %1213 = vmatprep.subr.mxu0 0.0
        %1214 = vmatpush1.msra.mxu0 %v1203
        %1215 = vmatprep.subr.mxu0 0.0
        %1216 = vmatpush1.msra.mxu0 %v1204
        %1217 = vmatprep.subr.mxu0 0.0
        %1218 = vmatpush1.msra.mxu0 0.0
        %1219 = vmatprep.subr.mxu0 0.0
        %1220 = vmatpush1.msra.mxu0 0.0
        %1221 = vmatprep.subr.mxu0 0.0
        %1222 = vmatpush1.msra.mxu0 0.0
        %1223 = vmatprep.subr.mxu0 0.0
        %1224 = vmatpush1.msra.mxu0 0.0
        %1225 = vmatprep.subr.mxu0 0.0
        %1226 = vmatpush1.msra.mxu0 0.0
        %1227 = vmatprep.subr.mxu0 0.0
        %1228 = vmatpush1.msra.mxu0 0.0
        %1229 = vmatprep.subr.mxu0 0.0
        %1230 = vmatpush1.msra.mxu0 0.0
        %1231 = vmatprep.subr.mxu0 0.0
        %1232 = vmatpush1.msra.mxu0 0.0
        %1233 = vmatprep.subr.mxu0 0.0
        %1234 = vmatpush1.msra.mxu0 0.0
        %1235 = vmatprep.subr.mxu0 0.0
        %1236 = vmatpush1.msra.mxu0 0.0
        %1237 = vmatprep.subr.mxu0 0.0
        %1238 = vmatpush1.msra.mxu0 0.0
        %1239 = vmatprep.subr.mxu0 0.0
        %1240 = vmatpush1.msra.mxu0 0.0
        %1241 = vmatprep.subr.mxu0 0.0
        %1242 = vmatpush1.msra.mxu0 0.0
        %1243 = vmatprep.subr.mxu0 0.0
        %1244 = vmatpush1.msra.mxu0 0.0
        %1245 = vmatprep.subr.mxu0 0.0
        %1246 = vmatpush1.msra.mxu0 0.0
        %1247 = vmatprep.subr.mxu0 0.0
        %1248 = vmatpush1.msra.mxu0 0.0
        %1249 = vmatprep.subr.mxu0 0.0
        %1250 = vmatpush1.msra.mxu0 0.0
        %1251 = vmatprep.subr.mxu0 0.0
        %1252 = vmatpush1.msra.mxu0 0.0
        %1253 = vmatprep.subr.mxu0 0.0
        %1254 = vmatpush1.msra.mxu0 0.0
        %1255 = vmatprep.subr.mxu0 0.0
        %1256 = vmatpush1.msra.mxu0 0.0
        %1257 = vmatprep.subr.mxu0 0.0
        %1258 = vmatpush1.msra.mxu0 0.0
        %1259 = vmatprep.subr.mxu0 0.0
        %1260 = vmatpush1.msra.mxu0 0.0
        %1261 = vmatprep.subr.mxu0 0.0
        %1262 = vmatpush1.msra.mxu0 0.0
        %1263 = vmatprep.subr.mxu0 0.0
        %1264 = vmatpush1.msra.mxu0 0.0
        %1265 = vmatprep.subr.mxu0 0.0
        %1266 = vmatpush1.msra.mxu0 0.0
        %1267 = vmatprep.subr.mxu0 0.0
        %1268 = vmatpush1.msra.mxu0 0.0
        %1269 = vmatprep.subr.mxu0 0.0
        %1270 = vmatpush1.msra.mxu0 0.0
        %1271 = vmatprep.subr.mxu0 0.0
        %1272 = vmatpush1.msra.mxu0 0.0
        %1273 = vmatprep.mubr.f32.mxu0 0.0
        %1274 = vmatmul.mubr.f32.gmra.mrb[0].mxu0 %v1207
        %v1275 = vpop.f32.mrb[0].mxu0
        %v1276 = vadd.f32 %v1205, %v1275
        %v1277 = vpop.f32.mrb[0].mxu0
        %1278 = vdwg.mxu0
        %v1279 = vmax.f32 %v1276, 0.0
        %v1280 = vld [vmem:[%s7] sm:$0xff]
        %v1281 = vld [vmem:[%s7 + $0x8] sm:$0xff]
        %v1282 = vld [vmem:[%s7 + $0x10] sm:$0xff]
        %v1283 = vld [vmem:[%s7 + $0x18] sm:$0xff]
        %v1284 = vld [vmem:[%s7 + $0x20] sm:$0xff]
        %v1285 = vld [vmem:[%s7 + $0x28] sm:$0xff]
        %v1286 = vld [vmem:[%s7 + $0x30] sm:$0xff]
        %v1287 = vld [vmem:[%s7 + $0x38] sm:$0xff]
        %v1288 = vld [vmem:[%s8] sm:$0x1]
        %vm1289 = vcmask 523264
        %v1291 = vsel %vm1289, %v1279, 0
        %1293 = vmatprep.subr.mxu0 0.0
        %1294 = vmatpush1.msra.mxu0 %v1280
        %1295 = vmatprep.subr.mxu0 0.0
        %1296 = vmatpush1.msra.mxu0 %v1281
        %1297 = vmatprep.subr.mxu0 0.0
        %1298 = vmatpush1.msra.mxu0 %v1282
        %1299 = vmatprep.subr.mxu0 0.0
        %1300 = vmatpush1.msra.mxu0 %v1283
        %1301 = vmatprep.subr.mxu0 0.0
        %1302 = vmatpush1.msra.mxu0 %v1284
        %1303 = vmatprep.subr.mxu0 0.0
        %1304 = vmatpush1.msra.mxu0 %v1285
        %1305 = vmatprep.subr.mxu0 0.0
        %1306 = vmatpush1.msra.mxu0 %v1286
        %1307 = vmatprep.subr.mxu0 0.0
        %1308 = vmatpush1.msra.mxu0 %v1287
        %1309 = vmatprep.subr.mxu0 0.0
        %1310 = vmatpush1.msra.mxu0 0.0
        %1311 = vmatprep.subr.mxu0 0.0
        %1312 = vmatpush1.msra.mxu0 0.0
        %1313 = vmatprep.subr.mxu0 0.0
        %1314 = vmatpush1.msra.mxu0 0.0
        %1315 = vmatprep.subr.mxu0 0.0
        %1316 = vmatpush1.msra.mxu0 0.0
        %1317 = vmatprep.subr.mxu0 0.0
        %1318 = vmatpush1.msra.mxu0 0.0
        %1319 = vmatprep.subr.mxu0 0.0
        %1320 = vmatpush1.msra.mxu0 0.0
        %1321 = vmatprep.subr.mxu0 0.0
        %1322 = vmatpush1.msra.mxu0 0.0
        %1323 = vmatprep.subr.mxu0 0.0
        %1324 = vmatpush1.msra.mxu0 0.0
        %1325 = vmatprep.subr.mxu0 0.0
        %1326 = vmatpush1.msra.mxu0 0.0
        %1327 = vmatprep.subr.mxu0 0.0
        %1328 = vmatpush1.msra.mxu0 0.0
        %1329 = vmatprep.subr.mxu0 0.0
        %1330 = vmatpush1.msra.mxu0 0.0
        %1331 = vmatprep.subr.mxu0 0.0
        %1332 = vmatpush1.msra.mxu0 0.0
        %1333 = vmatprep.subr.mxu0 0.0
        %1334 = vmatpush1.msra.mxu0 0.0
        %1335 = vmatprep.subr.mxu0 0.0
        %1336 = vmatpush1.msra.mxu0 0.0
        %1337 = vmatprep.subr.mxu0 0.0
        %1338 = vmatpush1.msra.mxu0 0.0
        %1339 = vmatprep.subr.mxu0 0.0
        %1340 = vmatpush1.msra.mxu0 0.0
        %1341 = vmatprep.subr.mxu0 0.0
        %1342 = vmatpush1.msra.mxu0 0.0
        %1343 = vmatprep.subr.mxu0 0.0
        %1344 = vmatpush1.msra.mxu0 0.0
        %1345 = vmatprep.subr.mxu0 0.0
        %1346 = vmatpush1.msra.mxu0 0.0
        %1347 = vmatprep.subr.mxu0 0.0
        %1348 = vmatpush1.msra.mxu0 0.0
        %1349 = vmatprep.subr.mxu0 0.0
        %1350 = vmatpush1.msra.mxu0 0.0
        %1351 = vmatprep.subr.mxu0 0.0
        %1352 = vmatpush1.msra.mxu0 0.0
        %1353 = vmatprep.subr.mxu0 0.0
        %1354 = vmatpush1.msra.mxu0 0.0
        %1355 = vmatprep.subr.mxu0 0.0
        %1356 = vmatpush1.msra.mxu0 0.0
        %1357 = vmatprep.mubr.f32.mxu0 0.0
        %1358 = vmatmul.mubr.f32.gmra.mrb[0].mxu0 %v1291
        %v1359 = vpop.f32.mrb[0].mxu0
        %v1360 = vadd.f32 %v1288, %v1359
        %v1361 = vpop.f32.mrb[0].mxu0
        %1362 = vdwg.mxu0
        %v1363 = vadd.f32 %v1360, %v1200
        %vm1364 = vcmask 253952
        %1365 = vst.msk [vmem:[%s359] sm:$0x1] %vm1364, %v1363
        %s1366 = sand.u32 %s232, 1
        %s1367 = scalar_lea.sflag [#allocation3], %s1366
        %s1368 = sand.u32 %s232, 1
        %s1369 = scalar_lea.vmem [#allocation2], %s1368
        %p1370 = scmp.lt.s32.totalorder %s25, 1
        %s1371 = scalar_select %p1370, %s25, 1
        %s1372 = smul.addr %s1371, 4
        %s1373 = scalar_lea.vmem %s10, %s1372
        // Predicated region
        $region57: #{encoder_layer_pallas.1} parent=55 // pred_check
          %p1374 = pneg %p242
        $region58: #{encoder_layer_pallas.1} parent=55 // pred_check_branch
          %1376 = sbr.rel (%p1374) target = $region60
        $region59: #{encoder_layer_pallas.1} parent=55 // pred_region
          %s1378 = ssub.s32 16, 16
          %1379 = vsyncadd %s1367, %s1378
          %s1380 = smul.addr %s25, 16
          %s1381 = scalar_lea.hbm %s9, %s1380
          %s1383 = sshll.u32 %s1369, 4
          %s1384 = int_to_ptr.vmem [resolvable:$true] %s1383
          %1386 = dma.vmem_to_hbm [thread:$0]  %s1384, 16, %s1381, %s1367
        $region60: #{encoder_layer_pallas.1} parent=55 // pred_fallthru
          _
        // Predicated region
        $region61: #{encoder_layer_pallas.1} parent=55 // pred_check
          %p1387 = pneg %p268
        $region62: #{encoder_layer_pallas.1} parent=55 // pred_check_branch
          %1389 = sbr.rel (%p1387) target = $region64
        $region63: #{encoder_layer_pallas.1} parent=55 // pred_region
          _
        $region64: #{encoder_layer_pallas.1} parent=55 // pred_fallthru
          _
      $region56: #{encoder_layer_pallas.1} parent=5 // pred_fallthru
        _
      %p1390 = scmp.le.s32.totalorder 2, %s20
      // Predicated region
      $region65: #{encoder_layer_pallas.1} parent=5 // pred_check
        %p1391 = pneg %p1390
      $region66: #{encoder_layer_pallas.1} parent=5 // pred_check_branch
        %1393 = sbr.rel (%p1391) target = $region68
      $region67: #{encoder_layer_pallas.1} parent=5 // pred_region
        %s1394 = ssub.s32 %s20, 2
        // Predicated region
        $region69: #{encoder_layer_pallas.1} parent=67 // pred_check
          %p1395 = pneg %p248
        $region70: #{encoder_layer_pallas.1} parent=67 // pred_check_branch
          %1397 = sbr.rel (%p1395) target = $region72
        $region71: #{encoder_layer_pallas.1} parent=67 // pred_region
          %s1398 = sand.u32 %s233, 1
          %s1399 = scalar_lea.sflag [#allocation3], %s1398
          %s1400 = sand.u32 %s233, 1
          %s1401 = scalar_lea.vmem [#allocation2], %s1400
          %1402 = dma.done %s1399, 16
        $region72: #{encoder_layer_pallas.1} parent=67 // pred_fallthru
          _
        // Predicated region
        $region73: #{encoder_layer_pallas.1} parent=67 // pred_check
          %p1403 = pneg %p274
        $region74: #{encoder_layer_pallas.1} parent=67 // pred_check_branch
          %1405 = sbr.rel (%p1403) target = $region76
        $region75: #{encoder_layer_pallas.1} parent=67 // pred_region
          %p1406 = scmp.lt.s32.totalorder %s26, 1
          %s1407 = scalar_select %p1406, %s26, 1
          %s1408 = smul.addr %s1407, 4
          %s1409 = scalar_lea.vmem %s10, %s1408
        $region76: #{encoder_layer_pallas.1} parent=67 // pred_fallthru
          _
      $region68: #{encoder_layer_pallas.1} parent=5 // pred_fallthru
        _
    $region6: #{encoder_layer_pallas.1} parent=1 // loop_footer
      %s24 = sadd.s32 1, %s20
    $region7: #{encoder_layer_pallas.1} parent=1 // loop_footer_branch
      %19 = sbr.rel target = $region3
    $region8: #{encoder_layer_pallas.1} parent=1 // loop_exit
      _
    %1410 = vsyncpa [#allocation3], 1
    %s1411 = scalar_lea.sflag [#allocation3], 1
    %1412 = vsyncpa %s1411, 1

</llo_original>
